<compile_context>
chip_gen: v7x
topology: tpu7x:2x2x1
jax: 0.10.0
libtpu: 0.0.40
codegen_flags: <defaults>
</compile_context>

<pallas_src>
import math

import jax
import jax.numpy as jnp
from jax import lax
from jax.experimental import pallas as pl
from jax.experimental.pallas import tpu as pltpu


_VMEM_LIMIT = 48 * 1024 * 1024  # raised scoped-VMEM budget, safe on v5e/v6e/v7x


# ----------------------------------------------------------------------------
# Stage 1a: fused Q/K/V projection for self-attention (X read once, (D,3D) W)
# ----------------------------------------------------------------------------
def _qkv_fused_kernel(x_ref, w_ref, b_ref, o_ref):
    # x_ref: (1, tm, D)    bf16
    # w_ref: (D, 3D)       bf16   (q columns pre-scaled by 1/sqrt(d_k))
    # b_ref: (1, 3D)       f32
    # o_ref: (3, 1, tm, D) bf16
    D = o_ref.shape[-1]
    acc = jnp.dot(x_ref[0], w_ref[...], preferred_element_type=jnp.float32)
    acc = (acc + b_ref[...]).astype(o_ref.dtype)            # (tm, 3D)
    for p in range(3):                                       # static lane slices
        o_ref[p, 0] = acc[:, p * D:(p + 1) * D]


def _qkv_projection_fused(x, w_fused, b_fused, *, tile_m):
    B, S, D = x.shape
    n_m = S // tile_m
    # TODO(synk): for D >= 4096 on v7x the (D,3D) bf16 weight block should be
    # N-tiled (extra grid axis) to fit the 64 MiB physical VMEM.
    return pl.pallas_call(
        _qkv_fused_kernel,
        out_shape=jax.ShapeDtypeStruct((3, B, S, D), jnp.bfloat16),
        grid_spec=pltpu.PrefetchScalarGridSpec(
            num_scalar_prefetch=0,
            grid=(B, n_m),
            in_specs=[
                pl.BlockSpec((1, tile_m, D), lambda b, m: (b, m, 0)),
                pl.BlockSpec((D, 3 * D), lambda b, m: (0, 0)),
                pl.BlockSpec((1, 3 * D), lambda b, m: (0, 0)),
            ],
            out_specs=pl.BlockSpec((3, 1, tile_m, D), lambda b, m: (0, b, m, 0)),
        ),
        compiler_params=pltpu.CompilerParams(
            dimension_semantics=("parallel", "parallel"),
            vmem_limit_bytes=_VMEM_LIMIT),
    )(x, w_fused, b_fused)


# ----------------------------------------------------------------------------
# Stage 1b: stacked Q/K/V projection for cross-attention (q, k, v distinct)
# ----------------------------------------------------------------------------
def _qkv_stacked_kernel(x_ref, w_ref, b_ref, o_ref):
    # x_ref: (1, 1, tm, D) bf16 ; w_ref: (1, D, D) bf16 ; b_ref: (1, 1, D) f32
    # o_ref: (1, 1, tm, D) bf16
    acc = jnp.dot(x_ref[0, 0], w_ref[0], preferred_element_type=jnp.float32)
    o_ref[0, 0] = (acc + b_ref[0]).astype(o_ref.dtype)


def _qkv_projection_stacked(x3, w_stacked, b_stacked, *, tile_m):
    P, B, S, D = x3.shape
    n_m = S // tile_m
    return pl.pallas_call(
        _qkv_stacked_kernel,
        out_shape=jax.ShapeDtypeStruct((P, B, S, D), jnp.bfloat16),
        grid_spec=pltpu.PrefetchScalarGridSpec(
            num_scalar_prefetch=0,
            grid=(P, B, n_m),
            in_specs=[
                pl.BlockSpec((1, 1, tile_m, D), lambda p, b, m: (p, b, m, 0)),
                pl.BlockSpec((1, D, D), lambda p, b, m: (p, 0, 0)),
                pl.BlockSpec((1, 1, D), lambda p, b, m: (p, 0, 0)),
            ],
            out_specs=pl.BlockSpec((1, 1, tile_m, D), lambda p, b, m: (p, b, m, 0)),
        ),
        compiler_params=pltpu.CompilerParams(
            dimension_semantics=("parallel", "parallel", "parallel"),
            vmem_limit_bytes=_VMEM_LIMIT),
    )(x3, w_stacked, b_stacked)


# ----------------------------------------------------------------------------
# Stage 2: flash attention (all heads per step) + single fused output projection
# ----------------------------------------------------------------------------
def _flash_attn_kernel(q_ref, k_ref, v_ref, wo_ref, bo_ref, o_ref,
                       m_scr, l_scr, ctx_scr):
    j = pl.program_id(2)
    nj = pl.num_programs(2)
    H, _, d_k = ctx_scr.shape

    # Flash state reset at the start of each (batch, q-tile)'s kv sweep.
    @pl.when(j == 0)
    def _():
        m_scr[...] = jnp.full_like(m_scr, -jnp.inf)
        l_scr[...] = jnp.zeros_like(l_scr)
        ctx_scr[...] = jnp.zeros_like(ctx_scr)

    q = q_ref[0, 0]   # (tq, D) bf16, query already scaled by 1/sqrt(d_k)
    k = k_ref[0, 0]   # (tk, D) bf16
    v = v_ref[0, 0]   # (tk, D) bf16

    for h in range(H):                     # static, 128-aligned lane slices
        c0, c1 = h * d_k, (h + 1) * d_k
        # Q_h @ K_h^T via dot_general contracting last dims (no K transpose).
        s = lax.dot_general(q[:, c0:c1], k[:, c0:c1], (((1,), (1,)), ((), ())),
                            preferred_element_type=jnp.float32)   # (tq, tk)
        # TODO(synk): optional attention mask (mask == 0 -> -1e9) not plumbed;
        # the module is exercised with mask=None.
        m_prev = m_scr[h]
        m_new = jnp.maximum(m_prev, jnp.max(s, axis=-1, keepdims=True))
        alpha = jnp.exp(m_prev - m_new)
        # exp kept in f32 (v5e-safe, accurate row sums); a bf16 exp is a
        # further EUP-throughput knob on v6e/v7x if it ever saturates.
        p = jnp.exp(s - m_new)
        l_scr[h] = alpha * l_scr[h] + jnp.sum(p, axis=-1, keepdims=True)
        ctx_scr[h] = alpha * ctx_scr[h] + jnp.dot(
            p.astype(jnp.bfloat16), v[:, c0:c1],
            preferred_element_type=jnp.float32)
        m_scr[h] = m_new

    # End of the kv sweep: normalize each head once (EUP reciprocal), build the
    # lane-dense (tq, D) context and run ONE output-projection matmul.
    @pl.when(j == nj - 1)
    def _():
        ctx_all = jnp.concatenate(
            [(ctx_scr[h] * pl.reciprocal(l_scr[h], approx=True)
              ).astype(jnp.bfloat16) for h in range(H)], axis=-1)   # (tq, D)
        out = jnp.dot(ctx_all, wo_ref[...], preferred_element_type=jnp.float32)
        o_ref[0] = (out + bo_ref[...]).astype(o_ref.dtype)


def _flash_attention(qkv, wo_t, bo, *, head, out_dtype, tile_q, tile_k):
    _, B, S, D = qkv.shape
    d_k = D // head
    n_q = S // tile_q
    n_k = S // tile_k

    # K/V specs could take pipeline_mode=pl.Buffered(3) if a profile ever shows
    # exposed KV DMA; the default 2-deep pipeline is kept here.
    q_spec = pl.BlockSpec((1, 1, tile_q, D), lambda b, i, j: (0, b, i, 0))
    k_spec = pl.BlockSpec((1, 1, tile_k, D), lambda b, i, j: (1, b, j, 0))
    v_spec = pl.BlockSpec((1, 1, tile_k, D), lambda b, i, j: (2, b, j, 0))
    wo_spec = pl.BlockSpec((D, D), lambda b, i, j: (0, 0))   # VMEM-resident
    bo_spec = pl.BlockSpec((1, D), lambda b, i, j: (0, 0))
    o_spec = pl.BlockSpec((1, tile_q, D), lambda b, i, j: (b, i, 0))

    return pl.pallas_call(
        _flash_attn_kernel,
        out_shape=jax.ShapeDtypeStruct((B, S, D), out_dtype),
        grid_spec=pltpu.PrefetchScalarGridSpec(
            num_scalar_prefetch=0,
            grid=(B, n_q, n_k),
            in_specs=[q_spec, k_spec, v_spec, wo_spec, bo_spec],
            out_specs=o_spec,
            scratch_shapes=[
                pltpu.VMEM((head, tile_q, 1), jnp.float32),    # running max m
                pltpu.VMEM((head, tile_q, 1), jnp.float32),    # running sum l
                pltpu.VMEM((head, tile_q, d_k), jnp.float32),  # context acc
            ]),
        compiler_params=pltpu.CompilerParams(
            dimension_semantics=("parallel", "parallel", "arbitrary"),
            vmem_limit_bytes=_VMEM_LIMIT),
    )(qkv, qkv, qkv, wo_t, bo)


# ----------------------------------------------------------------------------
# Host-side parameter prep (done ONCE, outside the hot path)
# ----------------------------------------------------------------------------
def prepare_params(params, *, head):
    """Transpose PyTorch (out,in) weights to (in,out), fold 1/sqrt(d_k) into the
    query projection, build both the fused (D,3D) and stacked (3,D,D) forms,
    cast MXU operands to bf16."""
    wq = jnp.asarray(params["wq"], jnp.float32)
    wk = jnp.asarray(params["wk"], jnp.float32)
    wv = jnp.asarray(params["wv"], jnp.float32)
    wo = jnp.asarray(params["wo"], jnp.float32)
    bq = jnp.asarray(params["bq"], jnp.float32)
    bk = jnp.asarray(params["bk"], jnp.float32)
    bv = jnp.asarray(params["bv"], jnp.float32)
    bo = jnp.asarray(params["bo"], jnp.float32)

    D = wq.shape[0]
    assert D % head == 0
    d_k = D // head
    inv = 1.0 / math.sqrt(d_k)

    return {
        "head": head,
        "d_k": d_k,
        # fused self-attention form: X @ (D,3D) -> [Q | K | V]
        "w_fused": jnp.concatenate([wq.T * inv, wk.T, wv.T], axis=1
                                   ).astype(jnp.bfloat16),            # (D, 3D)
        "b_fused": jnp.concatenate([bq * inv, bk, bv]).reshape(1, 3 * D),  # f32
        # stacked cross-attention fallback form
        "w_stacked": jnp.stack([wq.T * inv, wk.T, wv.T]).astype(jnp.bfloat16),
        "b_stacked": jnp.stack([bq * inv, bk, bv]).reshape(3, 1, D),
        # output projection
        "wo_t": wo.T.astype(jnp.bfloat16),                            # (D, D)
        "bo": bo.reshape(1, D),                                       # (1, D) f32
    }


def multi_headed_attention(q, k, v, prepped, *, tile_m=256, tile_q=256, tile_k=256):
    """q, k, v: (B, S, D).  prepped: output of prepare_params()."""
    B, S, D = q.shape
    head, d_k = prepped["head"], prepped["d_k"]
    assert D == head * d_k
    # TODO(synk): d_k < 128 would need lane-padding of the heads; not implemented.
    assert d_k % 128 == 0, "d_k must be a multiple of the 128-lane width"
    tile_m = min(tile_m, S)
    tile_q = min(tile_q, S)
    tile_k = min(tile_k, S)
    assert S % tile_m == 0 and S % tile_q == 0 and S % tile_k == 0

    # Feed bf16 activations to the kernels (ideally the caller already holds
    # bf16 activations; the cast typically fuses into the producing op).
    self_attn = (q is k) and (k is v)
    if self_attn:
        qkv = _qkv_projection_fused(q.astype(jnp.bfloat16),
                                    prepped["w_fused"], prepped["b_fused"],
                                    tile_m=tile_m)
    else:
        x3 = jnp.stack([q.astype(jnp.bfloat16), k.astype(jnp.bfloat16),
                        v.astype(jnp.bfloat16)], axis=0)          # (3, B, S, D)
        qkv = _qkv_projection_stacked(x3, prepped["w_stacked"],
                                      prepped["b_stacked"], tile_m=tile_m)

    return _flash_attention(qkv, prepped["wo_t"], prepped["bo"], head=head,
                            out_dtype=q.dtype, tile_q=tile_q, tile_k=tile_k)


# ----------------------------------------------------------------------------
# Pure-JAX f32 reference mirroring the PyTorch forward (mask=None)
# ----------------------------------------------------------------------------
def _reference(q, k, v, params, *, head):
    B, S, D = q.shape
    d_k = D // head

    def lin(x, w, b):
        return x @ jnp.asarray(w, jnp.float32).T + jnp.asarray(b, jnp.float32)

    def split(x):
        return x.reshape(B, S, head, d_k).transpose(0, 2, 1, 3)   # (B,H,S,d_k)

    Q = split(lin(q, params["wq"], params["bq"]))
    K = split(lin(k, params["wk"], params["bk"]))
    V = split(lin(v, params["wv"], params["bv"]))
    scores = jnp.einsum("bhqd,bhkd->bhqk", Q, K) / math.sqrt(d_k)
    p = jax.nn.softmax(scores, axis=-1)
    ctx = jnp.einsum("bhqk,bhkd->bhqd", p, V)
    ctx = ctx.transpose(0, 2, 1, 3).reshape(B, S, D)
    return lin(ctx, params["wo"], params["bo"])


if __name__ == "__main__":
    # Lane-dense small shapes: d_k = 128 (one full lane width per head),
    # S = 512 so the q-tile and kv-tile grid axes iterate at the 256 tiles.
    B, S, D, HEAD = 2, 512, 256, 2

    key = jax.random.PRNGKey(0)
    keys = jax.random.split(key, 12)

    # PyTorch nn.Linear layout: weight (D, D), bias (D,).
    scale = 1.0 / math.sqrt(D)
    params = {
        "wq": jax.random.uniform(keys[0], (D, D), jnp.float32, -scale, scale),
        "bq": jax.random.uniform(keys[1], (D,), jnp.float32, -scale, scale),
        "wk": jax.random.uniform(keys[2], (D, D), jnp.float32, -scale, scale),
        "bk": jax.random.uniform(keys[3], (D,), jnp.float32, -scale, scale),
        "wv": jax.random.uniform(keys[4], (D, D), jnp.float32, -scale, scale),
        "bv": jax.random.uniform(keys[5], (D,), jnp.float32, -scale, scale),
        "wo": jax.random.uniform(keys[6], (D, D), jnp.float32, -scale, scale),
        "bo": jax.random.uniform(keys[7], (D,), jnp.float32, -scale, scale),
    }

    q = jax.random.normal(keys[8], (B, S, D), jnp.float32)
    k = jax.random.normal(keys[9], (B, S, D), jnp.float32)
    v = jax.random.normal(keys[10], (B, S, D), jnp.float32)

    prepped = prepare_params(params, head=HEAD)      # one-time host-side prep

    # Self-attention: fused (D,3D) projection fast path.
    out_self = jax.block_until_ready(multi_headed_attention(q, q, q, prepped))
    ref_self = _reference(q, q, q, params, head=HEAD)
    assert out_self.shape == (B, S, D)
    assert jnp.allclose(out_self, ref_self, atol=5e-2, rtol=5e-2), float(
        jnp.max(jnp.abs(out_self - ref_self)))

    # Cross-attention: stacked fallback path (distinct q, k, v).
    out_x = jax.block_until_ready(multi_headed_attention(q, k, v, prepped))
    ref_x = _reference(q, k, v, params, head=HEAD)
    assert out_x.shape == (B, S, D)
    # bf16 MXU operands + approx EUP reciprocal -> bf16-level tolerance.
    assert jnp.allclose(out_x, ref_x, atol=5e-2, rtol=5e-2), float(
        jnp.max(jnp.abs(out_x - ref_x)))

    print("KERNEL_OK")
</pallas_src>

<mosaic_0001>
module attributes {stable_mosaic.version = 11 : i64} {
  func.func @_qkv_fused_kernel(%arg0: i32, %arg1: i32, %arg2: memref<1x256x256xbf16, #tpu.memory_space<vmem>>, %arg3: memref<256x768xbf16, #tpu.memory_space<vmem>>, %arg4: memref<1x768xf32, #tpu.memory_space<vmem>>, %arg5: memref<3x1x256x256xbf16, #tpu.memory_space<vmem>>) attributes {dimension_semantics = [#tpu.dimension_semantics<parallel>, #tpu.dimension_semantics<parallel>], iteration_bounds = array<i64: 2, 2>, scalar_prefetch = 0 : i64, scratch_operands = 0 : i64, tpu.core_type = #tpu.core_type<tc>, window_params = [{transform_indices = @transform_0, window_bounds = array<i64: 1, 256, 256>}, {pipeline_mode = #tpu.pipeline_mode<synchronous>, transform_indices = @transform_1, window_bounds = array<i64: 256, 768>}, {pipeline_mode = #tpu.pipeline_mode<synchronous>, transform_indices = @transform_2, window_bounds = array<i64: 1, 768>}, {transform_indices = @transform_3, window_bounds = array<i64: 3, 1, 256, 256>}]} {
    %c0 = arith.constant 0 : index
    %c0_0 = arith.constant 0 : index
    %c0_1 = arith.constant 0 : index
    %0 = vector.load %arg2[%c0, %c0_0, %c0_1] : memref<1x256x256xbf16, #tpu.memory_space<vmem>>, vector<1x256x256xbf16>
    %1 = vector.shape_cast %0 : vector<1x256x256xbf16> to vector<256x256xbf16>
    %c0_2 = arith.constant 0 : index
    %c0_3 = arith.constant 0 : index
    %2 = vector.load %arg3[%c0_2, %c0_3] : memref<256x768xbf16, #tpu.memory_space<vmem>>, vector<256x768xbf16>
    %cst = arith.constant dense<0.000000e+00> : vector<256x768xf32>
    %3 = tpu.matmul %1, %2, %cst {dimension_numbers = #tpu.dot_dimension_numbers<[1], [0], [0], [1], [0, 0, 1, 1], [], []>} : vector<256x256xbf16>, vector<256x768xbf16>, vector<256x768xf32> -> vector<256x768xf32>
    %c0_4 = arith.constant 0 : index
    %c0_5 = arith.constant 0 : index
    %4 = vector.load %arg4[%c0_4, %c0_5] : memref<1x768xf32, #tpu.memory_space<vmem>>, vector<1x768xf32>
    %5 = vector.broadcast %4 : vector<1x768xf32> to vector<256x768xf32>
    %6 = arith.addf %3, %5 : vector<256x768xf32>
    %7 = arith.truncf %6 : vector<256x768xf32> to vector<256x768xbf16>
    %8 = vector.extract_strided_slice %7 {offsets = [0, 0], sizes = [256, 256], strides = [1, 1]} : vector<256x768xbf16> to vector<256x256xbf16>
    %c0_6 = arith.constant 0 : index
    %c0_7 = arith.constant 0 : index
    %c0_8 = arith.constant 0 : index
    %c0_9 = arith.constant 0 : index
    %9 = vector.load %arg5[%c0_6, %c0_7, %c0_8, %c0_9] : memref<3x1x256x256xbf16, #tpu.memory_space<vmem>>, vector<1x1x256x256xbf16>
    %10 = vector.shape_cast %9 : vector<1x1x256x256xbf16> to vector<256x256xbf16>
    %11 = vector.shape_cast %8 : vector<256x256xbf16> to vector<1x1x256x256xbf16>
    tpu.vector_store %arg5[%c0_6, %c0_7, %c0_8, %c0_9], %11 {strides = array<i32>} : memref<3x1x256x256xbf16, #tpu.memory_space<vmem>>, vector<1x1x256x256xbf16>,
    %12 = vector.extract_strided_slice %7 {offsets = [0, 256], sizes = [256, 256], strides = [1, 1]} : vector<256x768xbf16> to vector<256x256xbf16>
    %c1 = arith.constant 1 : index
    %c0_10 = arith.constant 0 : index
    %c0_11 = arith.constant 0 : index
    %c0_12 = arith.constant 0 : index
    %13 = vector.load %arg5[%c1, %c0_10, %c0_11, %c0_12] : memref<3x1x256x256xbf16, #tpu.memory_space<vmem>>, vector<1x1x256x256xbf16>
    %14 = vector.shape_cast %13 : vector<1x1x256x256xbf16> to vector<256x256xbf16>
    %15 = vector.shape_cast %12 : vector<256x256xbf16> to vector<1x1x256x256xbf16>
    tpu.vector_store %arg5[%c1, %c0_10, %c0_11, %c0_12], %15 {strides = array<i32>} : memref<3x1x256x256xbf16, #tpu.memory_space<vmem>>, vector<1x1x256x256xbf16>,
    %16 = vector.extract_strided_slice %7 {offsets = [0, 512], sizes = [256, 256], strides = [1, 1]} : vector<256x768xbf16> to vector<256x256xbf16>
    %c2 = arith.constant 2 : index
    %c0_13 = arith.constant 0 : index
    %c0_14 = arith.constant 0 : index
    %c0_15 = arith.constant 0 : index
    %17 = vector.load %arg5[%c2, %c0_13, %c0_14, %c0_15] : memref<3x1x256x256xbf16, #tpu.memory_space<vmem>>, vector<1x1x256x256xbf16>
    %18 = vector.shape_cast %17 : vector<1x1x256x256xbf16> to vector<256x256xbf16>
    %19 = vector.shape_cast %16 : vector<256x256xbf16> to vector<1x1x256x256xbf16>
    tpu.vector_store %arg5[%c2, %c0_13, %c0_14, %c0_15], %19 {strides = array<i32>} : memref<3x1x256x256xbf16, #tpu.memory_space<vmem>>, vector<1x1x256x256xbf16>,
    return
  }
  func.func @transform_0(%arg0: i32, %arg1: i32) -> (i32, i32, i32) {
    %c0_i32 = arith.constant 0 : i32
    %c0_i32_0 = arith.constant 0 : i32
    return %arg0, %arg1, %c0_i32 : i32, i32, i32
  }
  func.func @transform_1(%arg0: i32, %arg1: i32) -> (i32, i32) {
    %c0_i32 = arith.constant 0 : i32
    %c0_i32_0 = arith.constant 0 : i32
    %c0_i32_1 = arith.constant 0 : i32
    return %c0_i32, %c0_i32_0 : i32, i32
  }
  func.func @transform_2(%arg0: i32, %arg1: i32) -> (i32, i32) {
    %c0_i32 = arith.constant 0 : i32
    %c0_i32_0 = arith.constant 0 : i32
    %c0_i32_1 = arith.constant 0 : i32
    return %c0_i32, %c0_i32_0 : i32, i32
  }
  func.func @transform_3(%arg0: i32, %arg1: i32) -> (i32, i32, i32, i32) {
    %c0_i32 = arith.constant 0 : i32
    %c0_i32_0 = arith.constant 0 : i32
    %c0_i32_1 = arith.constant 0 : i32
    return %c0_i32, %arg0, %arg1, %c0_i32_0 : i32, i32, i32, i32
  }
}

</mosaic_0001>

<llo_original>
// kernel: tpu_custom_call.1
$region0: #{tpu_custom_call.1}
  #allocation0 [shape = 'u32[]', space=smem, size = 0x4, offset = 0x4, fixed_abs, tag = 'smem constant byte address 0x4 - core index']
  #allocation1 [shape = 'u32[144,128]{1,0:T(1,128)}', space=vmem, size = 0x12000, scoped, tag = 'internal scratch']
  #allocation9 [shape = 's32[]', space=sflag, size = 0x4, offset = 0, fixed_abs, tag = 'sflag constant byte address 0x0 - dummy sync flag']
  %s0 = inlined_call_operand.hbm [shape: bf16[2,512,256], index: 0, kind: input, shape index: {}]
  %s1 = inlined_call_operand.hbm [shape: bf16[256,768], index: 1, kind: input, shape index: {}]
  %s2 = inlined_call_operand.hbm [shape: f32[1,768], index: 2, kind: input, shape index: {}]
  %s3 = inlined_call_operand.hbm [shape: bf16[3,2,512,256], index: 3, kind: output, shape index: {}]
  %s4 = sld [smem:[#allocation0]]
  $region57: #{tpu_custom_call.1} parent=0
    _
  %s6 = ssub.s32 1, %s4
  %s7 = scalar_select 0, %s6, %s4
  $region1: #{tpu_custom_call.1} parent=0
    #allocation2 [shape = 'u8[262144]{0}', space=vmem, size = 0x40000, scoped, tag = 'input window, operand 0']
    #allocation3 [shape = 's32[2]{0}', space=sflag, size = 0x8, scoped, tag = 'scoped memory for tpu_custom_call.1']
    #allocation4 [shape = 's32[2]{0}', space=sflag, size = 0x8, scoped, tag = 'scoped memory for tpu_custom_call.1']
    #allocation5 [shape = 'u8[393216]{0}', space=vmem, size = 0x60000, scoped, tag = 'input window, operand 1, single buffered']
    #allocation6 [shape = 's32[1]{0}', space=sflag, size = 0x4, scoped, tag = 'scoped memory for tpu_custom_call.1']
    #allocation7 [shape = 'u8[3072]{0}', space=vmem, size = 0xc00, scoped, tag = 'input window, operand 2, single buffered']
    #allocation8 [shape = 'u8[786432]{0}', space=vmem, size = 0xc0000, scoped, tag = 'output window, operand 0']
    %8 = vsyncpa [#allocation3], 0
    %s9 = scalar_lea.sflag [#allocation3], 1
    %10 = vsyncpa %s9, 0
    %11 = vsyncpa [#allocation6], 0
    %12 = vsyncpa [#allocation4], 0
    %s13 = scalar_lea.sflag [#allocation4], 1
    %14 = vsyncpa %s13, 0
    loop: start=0, step=1, limit=6
    $region2: #{tpu_custom_call.1} parent=1 // loop_pre_header
      _
    $region3: #{tpu_custom_call.1} parent=1 // loop_header
      %s16 = sphi 0, %s20
      %p17 = scmp.ge.s32.totalorder %s16, 6
      %s23 = sphi 0, %s35
      %s24 = sphi 0, %s31
      %s25 = sphi 0, %s23
      %s26 = sphi 0, %s24
      %s27 = sphi 0, %s25
      %s28 = sphi 0, %s26
      %s40 = sphi 0, %s42
      %s43 = sphi 0, %s40
      %s44 = sphi 0, %s43
      %s60 = sphi 0, %s44
      %s64 = sphi 0, %s64
      %s66 = sphi 0, %s64
      %s67 = sphi 0, %s66
      %s81 = sphi 0, %s67
      %s85 = sphi 0, %s85
      %s87 = sphi 0, %s85
      %s88 = sphi 0, %s87
      %s102 = sphi 0, %s88
      %s110 = sphi 0, %s112
      %s113 = sphi 0, %s110
      %s114 = sphi 0, %s113
      %s130 = sphi 0, %s114
    $region4: #{tpu_custom_call.1} parent=1 // loop_header_branch
      %19 = sbr.rel (%p17) target = $region8
    $region5: #{tpu_custom_call.1} parent=1 // loop_body
      %s21 = ssub.s32 %s16, 1
      %s22 = ssub.s32 %s16, 2
      %s29 = sadd.s32 1, %s24
      %p30 = scmp.ge.s32.totalorder %s29, 2
      %s31 = scalar_select %p30, 0, %s29
      %s32 = sadd.s32 1, %s23
      %s33 = scalar_select %p30, %s32, %s23
      %p34 = scmp.ge.s32.totalorder %s33, 2
      %s35 = scalar_select %p34, 0, %s33
      %s36 = ssub.s32 %s23, %s35
      %s37 = ssub.s32 %s24, %s31
      %s38 = sor.u32 %s36, %s37
      %p39 = scmp.eq.s32.totalorder %s38, 0
      %s41 = sadd.s32 %s40, 1
      %s42 = scalar_select %p39, %s40, %s41
      %p45 = pneg %p39
      %p46 = scmp.eq.s32.totalorder %s16, 3
      %p47 = por %p45, %p46
      %p48 = scmp.ne.s32.totalorder %s40, %s43
      %p49 = scmp.eq.s32.totalorder %s16, 0
      %p50 = por %p48, %p49
      %p51 = scmp.ne.s32.totalorder %s40, %s43
      %p52 = scmp.eq.s32.totalorder %s21, 3
      %p53 = por %p51, %p52
      %p54 = scmp.ne.s32.totalorder %s43, %s44
      %p55 = scmp.eq.s32.totalorder %s21, 0
      %p56 = por %p54, %p55
      %p57 = scmp.ne.s32.totalorder %s43, %s44
      %p58 = scmp.eq.s32.totalorder %s22, 3
      %p59 = por %p57, %p58
      %p61 = scmp.ne.s32.totalorder %s44, %s60
      %p62 = scmp.eq.s32.totalorder %s22, 0
      %p63 = por %p61, %p62
      %s65 = sadd.s32 %s64, 1
      %p68 = scmp.eq.s32.totalorder %s16, 3
      %p69 = scmp.ne.s32.totalorder %s64, %s66
      %p70 = scmp.eq.s32.totalorder %s16, 0
      %p71 = por %p69, %p70
      %p72 = scmp.ne.s32.totalorder %s64, %s66
      %p73 = scmp.eq.s32.totalorder %s21, 3
      %p74 = por %p72, %p73
      %p75 = scmp.ne.s32.totalorder %s66, %s67
      %p76 = scmp.eq.s32.totalorder %s21, 0
      %p77 = por %p75, %p76
      %p78 = scmp.ne.s32.totalorder %s66, %s67
      %p79 = scmp.eq.s32.totalorder %s22, 3
      %p80 = por %p78, %p79
      %p82 = scmp.ne.s32.totalorder %s67, %s81
      %p83 = scmp.eq.s32.totalorder %s22, 0
      %p84 = por %p82, %p83
      %s86 = sadd.s32 %s85, 1
      %p89 = scmp.eq.s32.totalorder %s16, 3
      %p90 = scmp.ne.s32.totalorder %s85, %s87
      %p91 = scmp.eq.s32.totalorder %s16, 0
      %p92 = por %p90, %p91
      %p93 = scmp.ne.s32.totalorder %s85, %s87
      %p94 = scmp.eq.s32.totalorder %s21, 3
      %p95 = por %p93, %p94
      %p96 = scmp.ne.s32.totalorder %s87, %s88
      %p97 = scmp.eq.s32.totalorder %s21, 0
      %p98 = por %p96, %p97
      %p99 = scmp.ne.s32.totalorder %s87, %s88
      %p100 = scmp.eq.s32.totalorder %s22, 3
      %p101 = por %p99, %p100
      %p103 = scmp.ne.s32.totalorder %s88, %s102
      %p104 = scmp.eq.s32.totalorder %s22, 0
      %p105 = por %p103, %p104
      %s106 = ssub.s32 %s23, %s35
      %s107 = ssub.s32 %s24, %s31
      %s108 = sor.u32 %s106, %s107
      %p109 = scmp.eq.s32.totalorder %s108, 0
      %s111 = sadd.s32 %s110, 1
      %s112 = scalar_select %p109, %s110, %s111
      %p115 = pneg %p109
      %p116 = scmp.eq.s32.totalorder %s16, 3
      %p117 = por %p115, %p116
      %p118 = scmp.ne.s32.totalorder %s110, %s113
      %p119 = scmp.eq.s32.totalorder %s16, 0
      %p120 = por %p118, %p119
      %p121 = scmp.ne.s32.totalorder %s110, %s113
      %p122 = scmp.eq.s32.totalorder %s21, 3
      %p123 = por %p121, %p122
      %p124 = scmp.ne.s32.totalorder %s113, %s114
      %p125 = scmp.eq.s32.totalorder %s21, 0
      %p126 = por %p124, %p125
      %p127 = scmp.ne.s32.totalorder %s113, %s114
      %p128 = scmp.eq.s32.totalorder %s22, 3
      %p129 = por %p127, %p128
      %p131 = scmp.ne.s32.totalorder %s114, %s130
      %p132 = scmp.eq.s32.totalorder %s22, 0
      %p133 = por %p131, %p132
      %p134 = scmp.le.s32.totalorder 1, %s16
      %p135 = scmp.lt.s32.totalorder %s16, 5
      %p136 = pnand %p134, %p135
      %p137 = pneg %p136
      // Predicated region
      $region9: #{tpu_custom_call.1} parent=5 // pred_check
        _
      $region10: #{tpu_custom_call.1} parent=5 // pred_check_branch
        %139 = sbr.rel (%p136) target = $region12
      $region11: #{tpu_custom_call.1} parent=5 // pred_region
        %s140 = ssub.s32 %s16, 1
        // Predicated region
        $region13: #{tpu_custom_call.1} parent=11 // pred_check
          %p141 = pneg %p77
        $region14: #{tpu_custom_call.1} parent=11 // pred_check_branch
          %143 = sbr.rel (%p141) target = $region16
        $region15: #{tpu_custom_call.1} parent=11 // pred_region
          %s145 = ssub.s32 12288, 12288
          %146 = vsyncadd [#allocation6], %s145
          %s147 = sshll.u32 [#allocation5], 4
          %s148 = int_to_ptr.vmem [resolvable:$true] %s147
          %153 = dma.hbm_to_vmem [thread:$0]  %s1, 12288, %s148, [#allocation6], 384, 384, 24
        $region16: #{tpu_custom_call.1} parent=11 // pred_fallthru
          _
        // Predicated region
        $region17: #{tpu_custom_call.1} parent=11 // pred_check
          %p154 = pneg %p98
        $region18: #{tpu_custom_call.1} parent=11 // pred_check_branch
          %156 = sbr.rel (%p154) target = $region20
        $region19: #{tpu_custom_call.1} parent=11 // pred_region
          %s158 = ssub.s32 96, 96
          %159 = vsyncadd [#allocation6], %s158
          %s161 = sshll.u32 [#allocation7], 4
          %s162 = int_to_ptr.vmem [resolvable:$true] %s161
          %164 = dma.hbm_to_vmem [thread:$0]  %s2, 96, %s162, [#allocation6]
        $region20: #{tpu_custom_call.1} parent=11 // pred_fallthru
          _
      $region12: #{tpu_custom_call.1} parent=5 // pred_fallthru
        _
      %p165 = scmp.lt.s32.totalorder %s16, 4
      // Predicated region
      $region21: #{tpu_custom_call.1} parent=5 // pred_check
        %p166 = pneg %p165
      $region22: #{tpu_custom_call.1} parent=5 // pred_check_branch
        %168 = sbr.rel (%p166) target = $region24
      $region23: #{tpu_custom_call.1} parent=5 // pred_region
        // Predicated region
        $region25: #{tpu_custom_call.1} parent=23 // pred_check
          %p169 = pneg %p50
        $region26: #{tpu_custom_call.1} parent=23 // pred_check_branch
          %171 = sbr.rel (%p169) target = $region28
        $region27: #{tpu_custom_call.1} parent=23 // pred_region
          %s172 = sand.u32 %s40, 1
          %s173 = scalar_lea.sflag [#allocation3], %s172
          %s174 = sand.u32 %s40, 1
          %s175 = smul.addr %s174, 256
          %s176 = scalar_lea.vmem [#allocation2], %s175
          %s177 = smul.u32 32, %s24
          %s179 = ssub.s32 4096, 4096
          %180 = vsyncadd %s173, %s179
          %s181 = smul.addr %s177, 2
          %s182 = smul.addr %s23, 128
          %s183 = sadd.s32 %s181, %s182
          %s184 = smul.addr %s183, 64
          %s185 = scalar_lea.hbm %s0, %s184
          %s186 = sshll.u32 %s176, 4
          %s187 = int_to_ptr.vmem [resolvable:$true] %s186
          %192 = dma.hbm_to_vmem [thread:$0]  %s185, 4096, %s187, %s173, 128, 128, 8
        $region28: #{tpu_custom_call.1} parent=23 // pred_fallthru
          _
      $region24: #{tpu_custom_call.1} parent=5 // pred_fallthru
        _
      %p193 = scmp.le.s32.totalorder 1, %s16
      %p194 = scmp.lt.s32.totalorder %s16, 5
      %p195 = pnand %p193, %p194
      %p196 = pneg %p195
      // Predicated region
      $region29: #{tpu_custom_call.1} parent=5 // pred_check
        _
      $region30: #{tpu_custom_call.1} parent=5 // pred_check_branch
        %198 = sbr.rel (%p195) target = $region32
      $region31: #{tpu_custom_call.1} parent=5 // pred_region
        %s199 = ssub.s32 %s16, 1
        %s200 = sand.u32 %s43, 1
        %s201 = scalar_lea.sflag [#allocation3], %s200
        %s202 = sand.u32 %s43, 1
        %s203 = smul.addr %s202, 256
        %s204 = scalar_lea.vmem [#allocation2], %s203
        // Predicated region
        $region33: #{tpu_custom_call.1} parent=31 // pred_check
          %p205 = pneg %p56
        $region34: #{tpu_custom_call.1} parent=31 // pred_check_branch
          %207 = sbr.rel (%p205) target = $region36
        $region35: #{tpu_custom_call.1} parent=31 // pred_region
          %208 = dma.done %s201, 4096
        $region36: #{tpu_custom_call.1} parent=31 // pred_fallthru
          _
        // Predicated region
        $region37: #{tpu_custom_call.1} parent=31 // pred_check
          %p209 = pneg %p77
        $region38: #{tpu_custom_call.1} parent=31 // pred_check_branch
          %211 = sbr.rel (%p209) target = $region40
        $region39: #{tpu_custom_call.1} parent=31 // pred_region
          %212 = dma.done [#allocation6], 12288
        $region40: #{tpu_custom_call.1} parent=31 // pred_fallthru
          _
        // Predicated region
        $region41: #{tpu_custom_call.1} parent=31 // pred_check
          %p213 = pneg %p98
        $region42: #{tpu_custom_call.1} parent=31 // pred_check_branch
          %215 = sbr.rel (%p213) target = $region44
        $region43: #{tpu_custom_call.1} parent=31 // pred_region
          %216 = dma.done [#allocation6], 96
        $region44: #{tpu_custom_call.1} parent=31 // pred_fallthru
          _
        %s217 = sand.u32 %s43, 1
        %s218 = scalar_lea.sflag [#allocation3], %s217
        %s219 = sand.u32 %s43, 1
        %s220 = smul.addr %s219, 256
        %s221 = scalar_lea.vmem [#allocation2], %s220
        %p222 = pneg %p56
        %p223 = pneg %p53
        %p224 = pneg %p77
        %p225 = pneg %p74
        %p226 = pneg %p98
        %p227 = pneg %p95
        %p228 = pneg %p126
        %p229 = pneg %p123
        %s230 = sand.u32 %s113, 1
        %s231 = scalar_lea.sflag [#allocation4], %s230
        %s232 = sand.u32 %s113, 1
        %s233 = smul.addr %s232, 768
        %s234 = scalar_lea.vmem [#allocation8], %s233
        %s235 = smul.u32 32, %s26
        %s236 = smul.u32 32, %s26
        %v237 = vld [vmem:[%s204] sm:$0xff]
        %v238 = vld [vmem:[%s204 + $0x8] sm:$0xff]
        %v239 = vld [vmem:[%s204 + $0x10] sm:$0xff]
        %v240 = vld [vmem:[%s204 + $0x18] sm:$0xff]
        %v241 = vld [vmem:[%s204 + $0x20] sm:$0xff]
        %v242 = vld [vmem:[%s204 + $0x28] sm:$0xff]
        %v243 = vld [vmem:[%s204 + $0x30] sm:$0xff]
        %v244 = vld [vmem:[%s204 + $0x38] sm:$0xff]
        %v245 = vld [vmem:[%s204 + $0x40] sm:$0xff]
        %v246 = vld [vmem:[%s204 + $0x48] sm:$0xff]
        %v247 = vld [vmem:[%s204 + $0x50] sm:$0xff]
        %v248 = vld [vmem:[%s204 + $0x58] sm:$0xff]
        %v249 = vld [vmem:[%s204 + $0x60] sm:$0xff]
        %v250 = vld [vmem:[%s204 + $0x68] sm:$0xff]
        %v251 = vld [vmem:[%s204 + $0x70] sm:$0xff]
        %v252 = vld [vmem:[%s204 + $0x78] sm:$0xff]
        %v253 = vld [vmem:[%s204 + $0x80] sm:$0xff]
        %v254 = vld [vmem:[%s204 + $0x88] sm:$0xff]
        %v255 = vld [vmem:[%s204 + $0x90] sm:$0xff]
        %v256 = vld [vmem:[%s204 + $0x98] sm:$0xff]
        %v257 = vld [vmem:[%s204 + $0xa0] sm:$0xff]
        %v258 = vld [vmem:[%s204 + $0xa8] sm:$0xff]
        %v259 = vld [vmem:[%s204 + $0xb0] sm:$0xff]
        %v260 = vld [vmem:[%s204 + $0xb8] sm:$0xff]
        %v261 = vld [vmem:[%s204 + $0xc0] sm:$0xff]
        %v262 = vld [vmem:[%s204 + $0xc8] sm:$0xff]
        %v263 = vld [vmem:[%s204 + $0xd0] sm:$0xff]
        %v264 = vld [vmem:[%s204 + $0xd8] sm:$0xff]
        %v265 = vld [vmem:[%s204 + $0xe0] sm:$0xff]
        %v266 = vld [vmem:[%s204 + $0xe8] sm:$0xff]
        %v267 = vld [vmem:[%s204 + $0xf0] sm:$0xff]
        %v268 = vld [vmem:[%s204 + $0xf8] sm:$0xff]
        %v269 = vld [vmem:[#allocation5] sm:$0xff]
        %v270 = vld [vmem:[#allocation5 + $0x8] sm:$0xff]
        %v271 = vld [vmem:[#allocation5 + $0x10] sm:$0xff]
        %v272 = vld [vmem:[#allocation5 + $0x18] sm:$0xff]
        %v273 = vld [vmem:[#allocation5 + $0x20] sm:$0xff]
        %v274 = vld [vmem:[#allocation5 + $0x28] sm:$0xff]
        %v275 = vld [vmem:[#allocation5 + $0x30] sm:$0xff]
        %v276 = vld [vmem:[#allocation5 + $0x38] sm:$0xff]
        %v277 = vld [vmem:[#allocation5 + $0x40] sm:$0xff]
        %v278 = vld [vmem:[#allocation5 + $0x48] sm:$0xff]
        %v279 = vld [vmem:[#allocation5 + $0x50] sm:$0xff]
        %v280 = vld [vmem:[#allocation5 + $0x58] sm:$0xff]
        %v281 = vld [vmem:[#allocation5 + $0x60] sm:$0xff]
        %v282 = vld [vmem:[#allocation5 + $0x68] sm:$0xff]
        %v283 = vld [vmem:[#allocation5 + $0x70] sm:$0xff]
        %v284 = vld [vmem:[#allocation5 + $0x78] sm:$0xff]
        %v285 = vld [vmem:[#allocation5 + $0x80] sm:$0xff]
        %v286 = vld [vmem:[#allocation5 + $0x88] sm:$0xff]
        %v287 = vld [vmem:[#allocation5 + $0x90] sm:$0xff]
        %v288 = vld [vmem:[#allocation5 + $0x98] sm:$0xff]
        %v289 = vld [vmem:[#allocation5 + $0xa0] sm:$0xff]
        %v290 = vld [vmem:[#allocation5 + $0xa8] sm:$0xff]
        %v291 = vld [vmem:[#allocation5 + $0xb0] sm:$0xff]
        %v292 = vld [vmem:[#allocation5 + $0xb8] sm:$0xff]
        %v293 = vld [vmem:[#allocation5 + $0xc0] sm:$0xff]
        %v294 = vld [vmem:[#allocation5 + $0xc8] sm:$0xff]
        %v295 = vld [vmem:[#allocation5 + $0xd0] sm:$0xff]
        %v296 = vld [vmem:[#allocation5 + $0xd8] sm:$0xff]
        %v297 = vld [vmem:[#allocation5 + $0xe0] sm:$0xff]
        %v298 = vld [vmem:[#allocation5 + $0xe8] sm:$0xff]
        %v299 = vld [vmem:[#allocation5 + $0xf0] sm:$0xff]
        %v300 = vld [vmem:[#allocation5 + $0xf8] sm:$0xff]
        %v301 = vld [vmem:[#allocation5 + $0x100] sm:$0xff]
        %v302 = vld [vmem:[#allocation5 + $0x108] sm:$0xff]
        %v303 = vld [vmem:[#allocation5 + $0x110] sm:$0xff]
        %v304 = vld [vmem:[#allocation5 + $0x118] sm:$0xff]
        %v305 = vld [vmem:[#allocation5 + $0x120] sm:$0xff]
        %v306 = vld [vmem:[#allocation5 + $0x128] sm:$0xff]
        %v307 = vld [vmem:[#allocation5 + $0x130] sm:$0xff]
        %v308 = vld [vmem:[#allocation5 + $0x138] sm:$0xff]
        %v309 = vld [vmem:[#allocation5 + $0x140] sm:$0xff]
        %v310 = vld [vmem:[#allocation5 + $0x148] sm:$0xff]
        %v311 = vld [vmem:[#allocation5 + $0x150] sm:$0xff]
        %v312 = vld [vmem:[#allocation5 + $0x158] sm:$0xff]
        %v313 = vld [vmem:[#allocation5 + $0x160] sm:$0xff]
        %v314 = vld [vmem:[#allocation5 + $0x168] sm:$0xff]
        %v315 = vld [vmem:[#allocation5 + $0x170] sm:$0xff]
        %v316 = vld [vmem:[#allocation5 + $0x178] sm:$0xff]
        %v317 = vld [vmem:[#allocation5 + $0x180] sm:$0xff]
        %v318 = vld [vmem:[#allocation5 + $0x188] sm:$0xff]
        %v319 = vld [vmem:[#allocation5 + $0x190] sm:$0xff]
        %v320 = vld [vmem:[#allocation5 + $0x198] sm:$0xff]
        %v321 = vld [vmem:[#allocation5 + $0x1a0] sm:$0xff]
        %v322 = vld [vmem:[#allocation5 + $0x1a8] sm:$0xff]
        %v323 = vld [vmem:[#allocation5 + $0x1b0] sm:$0xff]
        %v324 = vld [vmem:[#allocation5 + $0x1b8] sm:$0xff]
        %v325 = vld [vmem:[#allocation5 + $0x1c0] sm:$0xff]
        %v326 = vld [vmem:[#allocation5 + $0x1c8] sm:$0xff]
        %v327 = vld [vmem:[#allocation5 + $0x1d0] sm:$0xff]
        %v328 = vld [vmem:[#allocation5 + $0x1d8] sm:$0xff]
        %v329 = vld [vmem:[#allocation5 + $0x1e0] sm:$0xff]
        %v330 = vld [vmem:[#allocation5 + $0x1e8] sm:$0xff]
        %v331 = vld [vmem:[#allocation5 + $0x1f0] sm:$0xff]
        %v332 = vld [vmem:[#allocation5 + $0x1f8] sm:$0xff]
        %v333 = vld [vmem:[#allocation5 + $0x200] sm:$0xff]
        %v334 = vld [vmem:[#allocation5 + $0x208] sm:$0xff]
        %v335 = vld [vmem:[#allocation5 + $0x210] sm:$0xff]
        %v336 = vld [vmem:[#allocation5 + $0x218] sm:$0xff]
        %v337 = vld [vmem:[#allocation5 + $0x220] sm:$0xff]
        %v338 = vld [vmem:[#allocation5 + $0x228] sm:$0xff]
        %v339 = vld [vmem:[#allocation5 + $0x230] sm:$0xff]
        %v340 = vld [vmem:[#allocation5 + $0x238] sm:$0xff]
        %v341 = vld [vmem:[#allocation5 + $0x240] sm:$0xff]
        %v342 = vld [vmem:[#allocation5 + $0x248] sm:$0xff]
        %v343 = vld [vmem:[#allocation5 + $0x250] sm:$0xff]
        %v344 = vld [vmem:[#allocation5 + $0x258] sm:$0xff]
        %v345 = vld [vmem:[#allocation5 + $0x260] sm:$0xff]
        %v346 = vld [vmem:[#allocation5 + $0x268] sm:$0xff]
        %v347 = vld [vmem:[#allocation5 + $0x270] sm:$0xff]
        %v348 = vld [vmem:[#allocation5 + $0x278] sm:$0xff]
        %v349 = vld [vmem:[#allocation5 + $0x280] sm:$0xff]
        %v350 = vld [vmem:[#allocation5 + $0x288] sm:$0xff]
        %v351 = vld [vmem:[#allocation5 + $0x290] sm:$0xff]
        %v352 = vld [vmem:[#allocation5 + $0x298] sm:$0xff]
        %v353 = vld [vmem:[#allocation5 + $0x2a0] sm:$0xff]
        %v354 = vld [vmem:[#allocation5 + $0x2a8] sm:$0xff]
        %v355 = vld [vmem:[#allocation5 + $0x2b0] sm:$0xff]
        %v356 = vld [vmem:[#allocation5 + $0x2b8] sm:$0xff]
        %v357 = vld [vmem:[#allocation5 + $0x2c0] sm:$0xff]
        %v358 = vld [vmem:[#allocation5 + $0x2c8] sm:$0xff]
        %v359 = vld [vmem:[#allocation5 + $0x2d0] sm:$0xff]
        %v360 = vld [vmem:[#allocation5 + $0x2d8] sm:$0xff]
        %v361 = vld [vmem:[#allocation5 + $0x2e0] sm:$0xff]
        %v362 = vld [vmem:[#allocation5 + $0x2e8] sm:$0xff]
        %v363 = vld [vmem:[#allocation5 + $0x2f0] sm:$0xff]
        %v364 = vld [vmem:[#allocation5 + $0x2f8] sm:$0xff]
        %v365 = vld [vmem:[#allocation7] sm:$0x3f]
        %v367 = vlaneseq
        %v368 = vshrl.u32 %v367, 7
        %v369 = vsub.s32 0, %v368
        %v370 = vrot.slane %v365, %v369
        %v371 = vlaneseq
        %v372 = vshrl.u32 %v371, 7
        %v373 = vsub.s32 1, %v372
        %v374 = vrot.slane %v365, %v373
        %v375 = vlaneseq
        %v376 = vshrl.u32 %v375, 7
        %v377 = vsub.s32 2, %v376
        %v378 = vrot.slane %v365, %v377
        %v379 = vlaneseq
        %v380 = vshrl.u32 %v379, 7
        %v381 = vsub.s32 3, %v380
        %v382 = vrot.slane %v365, %v381
        %v383 = vlaneseq
        %v384 = vshrl.u32 %v383, 7
        %v385 = vsub.s32 4, %v384
        %v386 = vrot.slane %v365, %v385
        %v387 = vlaneseq
        %v388 = vshrl.u32 %v387, 7
        %v389 = vsub.s32 5, %v388
        %v390 = vrot.slane %v365, %v389
        %v429 = vunpack.c.l.b16 %v237
        %v430 = vunpack.c.h.b16 %v237
        %v431 = vunpack.c.l.b16 %v238
        %v432 = vunpack.c.h.b16 %v238
        %v433 = vunpack.c.l.b16 %v239
        %v434 = vunpack.c.h.b16 %v239
        %v435 = vunpack.c.l.b16 %v240
        %v436 = vunpack.c.h.b16 %v240
        %v437 = vunpack.c.l.b16 %v241
        %v438 = vunpack.c.h.b16 %v241
        %v439 = vunpack.c.l.b16 %v242
        %v440 = vunpack.c.h.b16 %v242
        %v441 = vunpack.c.l.b16 %v243
        %v442 = vunpack.c.h.b16 %v243
        %v443 = vunpack.c.l.b16 %v244
        %v444 = vunpack.c.h.b16 %v244
        %v445 = vunpack.c.l.b16 %v245
        %v446 = vunpack.c.h.b16 %v245
        %v447 = vunpack.c.l.b16 %v246
        %v448 = vunpack.c.h.b16 %v246
        %v449 = vunpack.c.l.b16 %v247
        %v450 = vunpack.c.h.b16 %v247
        %v451 = vunpack.c.l.b16 %v248
        %v452 = vunpack.c.h.b16 %v248
        %v453 = vunpack.c.l.b16 %v249
        %v454 = vunpack.c.h.b16 %v249
        %v455 = vunpack.c.l.b16 %v250
        %v456 = vunpack.c.h.b16 %v250
        %v457 = vunpack.c.l.b16 %v251
        %v458 = vunpack.c.h.b16 %v251
        %v459 = vunpack.c.l.b16 %v252
        %v460 = vunpack.c.h.b16 %v252
        %v461 = vunpack.c.l.b16 %v253
        %v462 = vunpack.c.h.b16 %v253
        %v463 = vunpack.c.l.b16 %v254
        %v464 = vunpack.c.h.b16 %v254
        %v465 = vunpack.c.l.b16 %v255
        %v466 = vunpack.c.h.b16 %v255
        %v467 = vunpack.c.l.b16 %v256
        %v468 = vunpack.c.h.b16 %v256
        %v469 = vunpack.c.l.b16 %v257
        %v470 = vunpack.c.h.b16 %v257
        %v471 = vunpack.c.l.b16 %v258
        %v472 = vunpack.c.h.b16 %v258
        %v473 = vunpack.c.l.b16 %v259
        %v474 = vunpack.c.h.b16 %v259
        %v475 = vunpack.c.l.b16 %v260
        %v476 = vunpack.c.h.b16 %v260
        %v477 = vunpack.c.l.b16 %v261
        %v478 = vunpack.c.h.b16 %v261
        %v479 = vunpack.c.l.b16 %v262
        %v480 = vunpack.c.h.b16 %v262
        %v481 = vunpack.c.l.b16 %v263
        %v482 = vunpack.c.h.b16 %v263
        %v483 = vunpack.c.l.b16 %v264
        %v484 = vunpack.c.h.b16 %v264
        %v485 = vunpack.c.l.b16 %v265
        %v486 = vunpack.c.h.b16 %v265
        %v487 = vunpack.c.l.b16 %v266
        %v488 = vunpack.c.h.b16 %v266
        %v489 = vunpack.c.l.b16 %v267
        %v490 = vunpack.c.h.b16 %v267
        %v491 = vunpack.c.l.b16 %v268
        %v492 = vunpack.c.h.b16 %v268
        %v493 = vpack.c.b16 %v431, %v429
        %v494 = vpack.c.b16 %v432, %v430
        %v495 = vpack.c.b16 %v435, %v433
        %v496 = vpack.c.b16 %v436, %v434
        %v497 = vpack.c.b16 %v439, %v437
        %v498 = vpack.c.b16 %v440, %v438
        %v499 = vpack.c.b16 %v443, %v441
        %v500 = vpack.c.b16 %v444, %v442
        %v501 = vpack.c.b16 %v447, %v445
        %v502 = vpack.c.b16 %v448, %v446
        %v503 = vpack.c.b16 %v451, %v449
        %v504 = vpack.c.b16 %v452, %v450
        %v505 = vpack.c.b16 %v455, %v453
        %v506 = vpack.c.b16 %v456, %v454
        %v507 = vpack.c.b16 %v459, %v457
        %v508 = vpack.c.b16 %v460, %v458
        %v509 = vpack.c.b16 %v463, %v461
        %v510 = vpack.c.b16 %v464, %v462
        %v511 = vpack.c.b16 %v467, %v465
        %v512 = vpack.c.b16 %v468, %v466
        %v513 = vpack.c.b16 %v471, %v469
        %v514 = vpack.c.b16 %v472, %v470
        %v515 = vpack.c.b16 %v475, %v473
        %v516 = vpack.c.b16 %v476, %v474
        %v517 = vpack.c.b16 %v479, %v477
        %v518 = vpack.c.b16 %v480, %v478
        %v519 = vpack.c.b16 %v483, %v481
        %v520 = vpack.c.b16 %v484, %v482
        %v521 = vpack.c.b16 %v487, %v485
        %v522 = vpack.c.b16 %v488, %v486
        %v523 = vpack.c.b16 %v491, %v489
        %v524 = vpack.c.b16 %v492, %v490
        %v653 = vunpack.c.l.b16 %v269
        %v654 = vunpack.c.h.b16 %v269
        %v655 = vunpack.c.l.b16 %v270
        %v656 = vunpack.c.h.b16 %v270
        %v657 = vunpack.c.l.b16 %v271
        %v658 = vunpack.c.h.b16 %v271
        %v659 = vunpack.c.l.b16 %v272
        %v660 = vunpack.c.h.b16 %v272
        %v661 = vunpack.c.l.b16 %v273
        %v662 = vunpack.c.h.b16 %v273
        %v663 = vunpack.c.l.b16 %v274
        %v664 = vunpack.c.h.b16 %v274
        %v665 = vunpack.c.l.b16 %v275
        %v666 = vunpack.c.h.b16 %v275
        %v667 = vunpack.c.l.b16 %v276
        %v668 = vunpack.c.h.b16 %v276
        %v669 = vunpack.c.l.b16 %v277
        %v670 = vunpack.c.h.b16 %v277
        %v671 = vunpack.c.l.b16 %v278
        %v672 = vunpack.c.h.b16 %v278
        %v673 = vunpack.c.l.b16 %v279
        %v674 = vunpack.c.h.b16 %v279
        %v675 = vunpack.c.l.b16 %v280
        %v676 = vunpack.c.h.b16 %v280
        %v677 = vunpack.c.l.b16 %v281
        %v678 = vunpack.c.h.b16 %v281
        %v679 = vunpack.c.l.b16 %v282
        %v680 = vunpack.c.h.b16 %v282
        %v681 = vunpack.c.l.b16 %v283
        %v682 = vunpack.c.h.b16 %v283
        %v683 = vunpack.c.l.b16 %v284
        %v684 = vunpack.c.h.b16 %v284
        %v685 = vunpack.c.l.b16 %v285
        %v686 = vunpack.c.h.b16 %v285
        %v687 = vunpack.c.l.b16 %v286
        %v688 = vunpack.c.h.b16 %v286
        %v689 = vunpack.c.l.b16 %v287
        %v690 = vunpack.c.h.b16 %v287
        %v691 = vunpack.c.l.b16 %v288
        %v692 = vunpack.c.h.b16 %v288
        %v693 = vunpack.c.l.b16 %v289
        %v694 = vunpack.c.h.b16 %v289
        %v695 = vunpack.c.l.b16 %v290
        %v696 = vunpack.c.h.b16 %v290
        %v697 = vunpack.c.l.b16 %v291
        %v698 = vunpack.c.h.b16 %v291
        %v699 = vunpack.c.l.b16 %v292
        %v700 = vunpack.c.h.b16 %v292
        %v701 = vunpack.c.l.b16 %v293
        %v702 = vunpack.c.h.b16 %v293
        %v703 = vunpack.c.l.b16 %v294
        %v704 = vunpack.c.h.b16 %v294
        %v705 = vunpack.c.l.b16 %v295
        %v706 = vunpack.c.h.b16 %v295
        %v707 = vunpack.c.l.b16 %v296
        %v708 = vunpack.c.h.b16 %v296
        %v709 = vunpack.c.l.b16 %v297
        %v710 = vunpack.c.h.b16 %v297
        %v711 = vunpack.c.l.b16 %v298
        %v712 = vunpack.c.h.b16 %v298
        %v713 = vunpack.c.l.b16 %v299
        %v714 = vunpack.c.h.b16 %v299
        %v715 = vunpack.c.l.b16 %v300
        %v716 = vunpack.c.h.b16 %v300
        %v717 = vunpack.c.l.b16 %v301
        %v718 = vunpack.c.h.b16 %v301
        %v719 = vunpack.c.l.b16 %v302
        %v720 = vunpack.c.h.b16 %v302
        %v721 = vunpack.c.l.b16 %v303
        %v722 = vunpack.c.h.b16 %v303
        %v723 = vunpack.c.l.b16 %v304
        %v724 = vunpack.c.h.b16 %v304
        %v725 = vunpack.c.l.b16 %v305
        %v726 = vunpack.c.h.b16 %v305
        %v727 = vunpack.c.l.b16 %v306
        %v728 = vunpack.c.h.b16 %v306
        %v729 = vunpack.c.l.b16 %v307
        %v730 = vunpack.c.h.b16 %v307
        %v731 = vunpack.c.l.b16 %v308
        %v732 = vunpack.c.h.b16 %v308
        %v733 = vunpack.c.l.b16 %v309
        %v734 = vunpack.c.h.b16 %v309
        %v735 = vunpack.c.l.b16 %v310
        %v736 = vunpack.c.h.b16 %v310
        %v737 = vunpack.c.l.b16 %v311
        %v738 = vunpack.c.h.b16 %v311
        %v739 = vunpack.c.l.b16 %v312
        %v740 = vunpack.c.h.b16 %v312
        %v741 = vunpack.c.l.b16 %v313
        %v742 = vunpack.c.h.b16 %v313
        %v743 = vunpack.c.l.b16 %v314
        %v744 = vunpack.c.h.b16 %v314
        %v745 = vunpack.c.l.b16 %v315
        %v746 = vunpack.c.h.b16 %v315
        %v747 = vunpack.c.l.b16 %v316
        %v748 = vunpack.c.h.b16 %v316
        %v749 = vunpack.c.l.b16 %v317
        %v750 = vunpack.c.h.b16 %v317
        %v751 = vunpack.c.l.b16 %v318
        %v752 = vunpack.c.h.b16 %v318
        %v753 = vunpack.c.l.b16 %v319
        %v754 = vunpack.c.h.b16 %v319
        %v755 = vunpack.c.l.b16 %v320
        %v756 = vunpack.c.h.b16 %v320
        %v757 = vunpack.c.l.b16 %v321
        %v758 = vunpack.c.h.b16 %v321
        %v759 = vunpack.c.l.b16 %v322
        %v760 = vunpack.c.h.b16 %v322
        %v761 = vunpack.c.l.b16 %v323
        %v762 = vunpack.c.h.b16 %v323
        %v763 = vunpack.c.l.b16 %v324
        %v764 = vunpack.c.h.b16 %v324
        %v765 = vunpack.c.l.b16 %v325
        %v766 = vunpack.c.h.b16 %v325
        %v767 = vunpack.c.l.b16 %v326
        %v768 = vunpack.c.h.b16 %v326
        %v769 = vunpack.c.l.b16 %v327
        %v770 = vunpack.c.h.b16 %v327
        %v771 = vunpack.c.l.b16 %v328
        %v772 = vunpack.c.h.b16 %v328
        %v773 = vunpack.c.l.b16 %v329
        %v774 = vunpack.c.h.b16 %v329
        %v775 = vunpack.c.l.b16 %v330
        %v776 = vunpack.c.h.b16 %v330
        %v777 = vunpack.c.l.b16 %v331
        %v778 = vunpack.c.h.b16 %v331
        %v779 = vunpack.c.l.b16 %v332
        %v780 = vunpack.c.h.b16 %v332
        %v781 = vunpack.c.l.b16 %v333
        %v782 = vunpack.c.h.b16 %v333
        %v783 = vunpack.c.l.b16 %v334
        %v784 = vunpack.c.h.b16 %v334
        %v785 = vunpack.c.l.b16 %v335
        %v786 = vunpack.c.h.b16 %v335
        %v787 = vunpack.c.l.b16 %v336
        %v788 = vunpack.c.h.b16 %v336
        %v789 = vunpack.c.l.b16 %v337
        %v790 = vunpack.c.h.b16 %v337
        %v791 = vunpack.c.l.b16 %v338
        %v792 = vunpack.c.h.b16 %v338
        %v793 = vunpack.c.l.b16 %v339
        %v794 = vunpack.c.h.b16 %v339
        %v795 = vunpack.c.l.b16 %v340
        %v796 = vunpack.c.h.b16 %v340
        %v797 = vunpack.c.l.b16 %v341
        %v798 = vunpack.c.h.b16 %v341
        %v799 = vunpack.c.l.b16 %v342
        %v800 = vunpack.c.h.b16 %v342
        %v801 = vunpack.c.l.b16 %v343
        %v802 = vunpack.c.h.b16 %v343
        %v803 = vunpack.c.l.b16 %v344
        %v804 = vunpack.c.h.b16 %v344
        %v805 = vunpack.c.l.b16 %v345
        %v806 = vunpack.c.h.b16 %v345
        %v807 = vunpack.c.l.b16 %v346
        %v808 = vunpack.c.h.b16 %v346
        %v809 = vunpack.c.l.b16 %v347
        %v810 = vunpack.c.h.b16 %v347
        %v811 = vunpack.c.l.b16 %v348
        %v812 = vunpack.c.h.b16 %v348
        %v813 = vunpack.c.l.b16 %v349
        %v814 = vunpack.c.h.b16 %v349
        %v815 = vunpack.c.l.b16 %v350
        %v816 = vunpack.c.h.b16 %v350
        %v817 = vunpack.c.l.b16 %v351
        %v818 = vunpack.c.h.b16 %v351
        %v819 = vunpack.c.l.b16 %v352
        %v820 = vunpack.c.h.b16 %v352
        %v821 = vunpack.c.l.b16 %v353
        %v822 = vunpack.c.h.b16 %v353
        %v823 = vunpack.c.l.b16 %v354
        %v824 = vunpack.c.h.b16 %v354
        %v825 = vunpack.c.l.b16 %v355
        %v826 = vunpack.c.h.b16 %v355
        %v827 = vunpack.c.l.b16 %v356
        %v828 = vunpack.c.h.b16 %v356
        %v829 = vunpack.c.l.b16 %v357
        %v830 = vunpack.c.h.b16 %v357
        %v831 = vunpack.c.l.b16 %v358
        %v832 = vunpack.c.h.b16 %v358
        %v833 = vunpack.c.l.b16 %v359
        %v834 = vunpack.c.h.b16 %v359
        %v835 = vunpack.c.l.b16 %v360
        %v836 = vunpack.c.h.b16 %v360
        %v837 = vunpack.c.l.b16 %v361
        %v838 = vunpack.c.h.b16 %v361
        %v839 = vunpack.c.l.b16 %v362
        %v840 = vunpack.c.h.b16 %v362
        %v841 = vunpack.c.l.b16 %v363
        %v842 = vunpack.c.h.b16 %v363
        %v843 = vunpack.c.l.b16 %v364
        %v844 = vunpack.c.h.b16 %v364
        %v845 = vpack.c.b16 %v659, %v653
        %v846 = vpack.c.b16 %v660, %v654
        %v847 = vpack.c.b16 %v661, %v655
        %v848 = vpack.c.b16 %v662, %v656
        %v849 = vpack.c.b16 %v663, %v657
        %v850 = vpack.c.b16 %v664, %v658
        %v851 = vpack.c.b16 %v671, %v665
        %v852 = vpack.c.b16 %v672, %v666
        %v853 = vpack.c.b16 %v673, %v667
        %v854 = vpack.c.b16 %v674, %v668
        %v855 = vpack.c.b16 %v675, %v669
        %v856 = vpack.c.b16 %v676, %v670
        %v857 = vpack.c.b16 %v683, %v677
        %v858 = vpack.c.b16 %v684, %v678
        %v859 = vpack.c.b16 %v685, %v679
        %v860 = vpack.c.b16 %v686, %v680
        %v861 = vpack.c.b16 %v687, %v681
        %v862 = vpack.c.b16 %v688, %v682
        %v863 = vpack.c.b16 %v695, %v689
        %v864 = vpack.c.b16 %v696, %v690
        %v865 = vpack.c.b16 %v697, %v691
        %v866 = vpack.c.b16 %v698, %v692
        %v867 = vpack.c.b16 %v699, %v693
        %v868 = vpack.c.b16 %v700, %v694
        %v869 = vpack.c.b16 %v707, %v701
        %v870 = vpack.c.b16 %v708, %v702
        %v871 = vpack.c.b16 %v709, %v703
        %v872 = vpack.c.b16 %v710, %v704
        %v873 = vpack.c.b16 %v711, %v705
        %v874 = vpack.c.b16 %v712, %v706
        %v875 = vpack.c.b16 %v719, %v713
        %v876 = vpack.c.b16 %v720, %v714
        %v877 = vpack.c.b16 %v721, %v715
        %v878 = vpack.c.b16 %v722, %v716
        %v879 = vpack.c.b16 %v723, %v717
        %v880 = vpack.c.b16 %v724, %v718
        %v881 = vpack.c.b16 %v731, %v725
        %v882 = vpack.c.b16 %v732, %v726
        %v883 = vpack.c.b16 %v733, %v727
        %v884 = vpack.c.b16 %v734, %v728
        %v885 = vpack.c.b16 %v735, %v729
        %v886 = vpack.c.b16 %v736, %v730
        %v887 = vpack.c.b16 %v743, %v737
        %v888 = vpack.c.b16 %v744, %v738
        %v889 = vpack.c.b16 %v745, %v739
        %v890 = vpack.c.b16 %v746, %v740
        %v891 = vpack.c.b16 %v747, %v741
        %v892 = vpack.c.b16 %v748, %v742
        %v893 = vpack.c.b16 %v755, %v749
        %v894 = vpack.c.b16 %v756, %v750
        %v895 = vpack.c.b16 %v757, %v751
        %v896 = vpack.c.b16 %v758, %v752
        %v897 = vpack.c.b16 %v759, %v753
        %v898 = vpack.c.b16 %v760, %v754
        %v899 = vpack.c.b16 %v767, %v761
        %v900 = vpack.c.b16 %v768, %v762
        %v901 = vpack.c.b16 %v769, %v763
        %v902 = vpack.c.b16 %v770, %v764
        %v903 = vpack.c.b16 %v771, %v765
        %v904 = vpack.c.b16 %v772, %v766
        %v905 = vpack.c.b16 %v779, %v773
        %v906 = vpack.c.b16 %v780, %v774
        %v907 = vpack.c.b16 %v781, %v775
        %v908 = vpack.c.b16 %v782, %v776
        %v909 = vpack.c.b16 %v783, %v777
        %v910 = vpack.c.b16 %v784, %v778
        %v911 = vpack.c.b16 %v791, %v785
        %v912 = vpack.c.b16 %v792, %v786
        %v913 = vpack.c.b16 %v793, %v787
        %v914 = vpack.c.b16 %v794, %v788
        %v915 = vpack.c.b16 %v795, %v789
        %v916 = vpack.c.b16 %v796, %v790
        %v917 = vpack.c.b16 %v803, %v797
        %v918 = vpack.c.b16 %v804, %v798
        %v919 = vpack.c.b16 %v805, %v799
        %v920 = vpack.c.b16 %v806, %v800
        %v921 = vpack.c.b16 %v807, %v801
        %v922 = vpack.c.b16 %v808, %v802
        %v923 = vpack.c.b16 %v815, %v809
        %v924 = vpack.c.b16 %v816, %v810
        %v925 = vpack.c.b16 %v817, %v811
        %v926 = vpack.c.b16 %v818, %v812
        %v927 = vpack.c.b16 %v819, %v813
        %v928 = vpack.c.b16 %v820, %v814
        %v929 = vpack.c.b16 %v827, %v821
        %v930 = vpack.c.b16 %v828, %v822
        %v931 = vpack.c.b16 %v829, %v823
        %v932 = vpack.c.b16 %v830, %v824
        %v933 = vpack.c.b16 %v831, %v825
        %v934 = vpack.c.b16 %v832, %v826
        %v935 = vpack.c.b16 %v839, %v833
        %v936 = vpack.c.b16 %v840, %v834
        %v937 = vpack.c.b16 %v841, %v835
        %v938 = vpack.c.b16 %v842, %v836
        %v939 = vpack.c.b16 %v843, %v837
        %v940 = vpack.c.b16 %v844, %v838
        %1037 = vmatprep.subr.bf16.mxu0 %v846
        %1038 = vmatpush1.bf16.msra.mxu0 %v845
        %1039 = vmatprep.subr.bf16.mxu0 %v852
        %1040 = vmatpush1.bf16.msra.mxu0 %v851
        %1041 = vmatprep.subr.bf16.mxu0 %v858
        %1042 = vmatpush1.bf16.msra.mxu0 %v857
        %1043 = vmatprep.subr.bf16.mxu0 %v864
        %1044 = vmatpush1.bf16.msra.mxu0 %v863
        %1045 = vmatprep.subr.bf16.mxu0 %v870
        %1046 = vmatpush1.bf16.msra.mxu0 %v869
        %1047 = vmatprep.subr.bf16.mxu0 %v876
        %1048 = vmatpush1.bf16.msra.mxu0 %v875
        %1049 = vmatprep.subr.bf16.mxu0 %v882
        %1050 = vmatpush1.bf16.msra.mxu0 %v881
        %1051 = vmatprep.subr.bf16.mxu0 %v888
        %1052 = vmatpush1.bf16.msra.mxu0 %v887
        %1053 = vmatprep.subr.bf16.mxu0 %v894
        %1054 = vmatpush1.bf16.msra.mxu0 %v893
        %1055 = vmatprep.subr.bf16.mxu0 %v900
        %1056 = vmatpush1.bf16.msra.mxu0 %v899
        %1057 = vmatprep.subr.bf16.mxu0 %v906
        %1058 = vmatpush1.bf16.msra.mxu0 %v905
        %1059 = vmatprep.subr.bf16.mxu0 %v912
        %1060 = vmatpush1.bf16.msra.mxu0 %v911
        %1061 = vmatprep.subr.bf16.mxu0 %v918
        %1062 = vmatpush1.bf16.msra.mxu0 %v917
        %1063 = vmatprep.subr.bf16.mxu0 %v924
        %1064 = vmatpush1.bf16.msra.mxu0 %v923
        %1065 = vmatprep.subr.bf16.mxu0 %v930
        %1066 = vmatpush1.bf16.msra.mxu0 %v929
        %1067 = vmatprep.subr.bf16.mxu0 %v936
        %1068 = vmatpush1.bf16.msra.mxu0 %v935
        %1069 = vmatprep.mubr.bf16.mxu0 %v494
        %1070 = vmatmul.mubr.bf16.gmra.mrb[0].mxu0 %v493
        %v1071 = vpop.f32.mrb[0].mxu0
        %v1072 = vadd.f32 %v370, %v1071
        %v1073 = vpop.f32.mrb[0].mxu0
        %v1074 = vadd.f32 %v374, %v1073
        %v1075 = vpop.f32.mrb[0].mxu0
        %v1076 = vadd.f32 %v370, %v1075
        %v1077 = vpop.f32.mrb[0].mxu0
        %v1078 = vadd.f32 %v374, %v1077
        %1079 = vmatprep.mubr.bf16.mxu0 %v496
        %1080 = vmatmul.mubr.bf16.gmra.mrb[0].mxu0 %v495
        %v1081 = vpop.f32.mrb[0].mxu0
        %v1082 = vadd.f32 %v370, %v1081
        %v1083 = vpop.f32.mrb[0].mxu0
        %v1084 = vadd.f32 %v374, %v1083
        %v1085 = vpop.f32.mrb[0].mxu0
        %v1086 = vadd.f32 %v370, %v1085
        %v1087 = vpop.f32.mrb[0].mxu0
        %v1088 = vadd.f32 %v374, %v1087
        %1089 = vmatprep.mubr.bf16.mxu0 %v498
        %1090 = vmatmul.mubr.bf16.gmra.mrb[0].mxu0 %v497
        %v1091 = vpop.f32.mrb[0].mxu0
        %v1092 = vadd.f32 %v370, %v1091
        %v1093 = vpop.f32.mrb[0].mxu0
        %v1094 = vadd.f32 %v374, %v1093
        %v1095 = vpop.f32.mrb[0].mxu0
        %v1096 = vadd.f32 %v370, %v1095
        %v1097 = vpop.f32.mrb[0].mxu0
        %v1098 = vadd.f32 %v374, %v1097
        %1099 = vmatprep.mubr.bf16.mxu0 %v500
        %1100 = vmatmul.mubr.bf16.gmra.mrb[0].mxu0 %v499
        %v1101 = vpop.f32.mrb[0].mxu0
        %v1102 = vadd.f32 %v370, %v1101
        %v1103 = vpop.f32.mrb[0].mxu0
        %v1104 = vadd.f32 %v374, %v1103
        %v1105 = vpop.f32.mrb[0].mxu0
        %v1106 = vadd.f32 %v370, %v1105
        %v1107 = vpop.f32.mrb[0].mxu0
        %v1108 = vadd.f32 %v374, %v1107
        %1109 = vmatprep.mubr.bf16.mxu0 %v502
        %1110 = vmatmul.mubr.bf16.gmra.mrb[0].mxu0 %v501
        %v1111 = vpop.f32.mrb[0].mxu0
        %v1112 = vadd.f32 %v370, %v1111
        %v1113 = vpop.f32.mrb[0].mxu0
        %v1114 = vadd.f32 %v374, %v1113
        %v1115 = vpop.f32.mrb[0].mxu0
        %v1116 = vadd.f32 %v370, %v1115
        %v1117 = vpop.f32.mrb[0].mxu0
        %v1118 = vadd.f32 %v374, %v1117
        %1119 = vmatprep.mubr.bf16.mxu0 %v504
        %1120 = vmatmul.mubr.bf16.gmra.mrb[0].mxu0 %v503
        %v1121 = vpop.f32.mrb[0].mxu0
        %v1122 = vadd.f32 %v370, %v1121
        %v1123 = vpop.f32.mrb[0].mxu0
        %v1124 = vadd.f32 %v374, %v1123
        %v1125 = vpop.f32.mrb[0].mxu0
        %v1126 = vadd.f32 %v370, %v1125
        %v1127 = vpop.f32.mrb[0].mxu0
        %v1128 = vadd.f32 %v374, %v1127
        %1129 = vmatprep.mubr.bf16.mxu0 %v506
        %1130 = vmatmul.mubr.bf16.gmra.mrb[0].mxu0 %v505
        %v1131 = vpop.f32.mrb[0].mxu0
        %v1132 = vadd.f32 %v370, %v1131
        %v1133 = vpop.f32.mrb[0].mxu0
        %v1134 = vadd.f32 %v374, %v1133
        %v1135 = vpop.f32.mrb[0].mxu0
        %v1136 = vadd.f32 %v370, %v1135
        %v1137 = vpop.f32.mrb[0].mxu0
        %v1138 = vadd.f32 %v374, %v1137
        %1139 = vmatprep.mubr.bf16.mxu0 %v508
        %1140 = vmatmul.mubr.bf16.gmra.mrb[0].mxu0 %v507
        %v1141 = vpop.f32.mrb[0].mxu0
        %v1142 = vadd.f32 %v370, %v1141
        %v1143 = vpop.f32.mrb[0].mxu0
        %v1144 = vadd.f32 %v374, %v1143
        %v1145 = vpop.f32.mrb[0].mxu0
        %v1146 = vadd.f32 %v370, %v1145
        %v1147 = vpop.f32.mrb[0].mxu0
        %v1148 = vadd.f32 %v374, %v1147
        %1149 = vmatprep.mubr.bf16.mxu0 %v510
        %1150 = vmatmul.mubr.bf16.gmra.mrb[0].mxu0 %v509
        %v1151 = vpop.f32.mrb[0].mxu0
        %v1152 = vadd.f32 %v370, %v1151
        %v1153 = vpop.f32.mrb[0].mxu0
        %v1154 = vadd.f32 %v374, %v1153
        %v1155 = vpop.f32.mrb[0].mxu0
        %v1156 = vadd.f32 %v370, %v1155
        %v1157 = vpop.f32.mrb[0].mxu0
        %v1158 = vadd.f32 %v374, %v1157
        %1159 = vmatprep.mubr.bf16.mxu0 %v512
        %1160 = vmatmul.mubr.bf16.gmra.mrb[0].mxu0 %v511
        %v1161 = vpop.f32.mrb[0].mxu0
        %v1162 = vadd.f32 %v370, %v1161
        %v1163 = vpop.f32.mrb[0].mxu0
        %v1164 = vadd.f32 %v374, %v1163
        %v1165 = vpop.f32.mrb[0].mxu0
        %v1166 = vadd.f32 %v370, %v1165
        %v1167 = vpop.f32.mrb[0].mxu0
        %v1168 = vadd.f32 %v374, %v1167
        %1169 = vmatprep.mubr.bf16.mxu0 %v514
        %1170 = vmatmul.mubr.bf16.gmra.mrb[0].mxu0 %v513
        %v1171 = vpop.f32.mrb[0].mxu0
        %v1172 = vadd.f32 %v370, %v1171
        %v1173 = vpop.f32.mrb[0].mxu0
        %v1174 = vadd.f32 %v374, %v1173
        %v1175 = vpop.f32.mrb[0].mxu0
        %v1176 = vadd.f32 %v370, %v1175
        %v1177 = vpop.f32.mrb[0].mxu0
        %v1178 = vadd.f32 %v374, %v1177
        %1179 = vmatprep.mubr.bf16.mxu0 %v516
        %1180 = vmatmul.mubr.bf16.gmra.mrb[0].mxu0 %v515
        %v1181 = vpop.f32.mrb[0].mxu0
        %v1182 = vadd.f32 %v370, %v1181
        %v1183 = vpop.f32.mrb[0].mxu0
        %v1184 = vadd.f32 %v374, %v1183
        %v1185 = vpop.f32.mrb[0].mxu0
        %v1186 = vadd.f32 %v370, %v1185
        %v1187 = vpop.f32.mrb[0].mxu0
        %v1188 = vadd.f32 %v374, %v1187
        %1189 = vmatprep.mubr.bf16.mxu0 %v518
        %1190 = vmatmul.mubr.bf16.gmra.mrb[0].mxu0 %v517
        %v1191 = vpop.f32.mrb[0].mxu0
        %v1192 = vadd.f32 %v370, %v1191
        %v1193 = vpop.f32.mrb[0].mxu0
        %v1194 = vadd.f32 %v374, %v1193
        %v1195 = vpop.f32.mrb[0].mxu0
        %v1196 = vadd.f32 %v370, %v1195
        %v1197 = vpop.f32.mrb[0].mxu0
        %v1198 = vadd.f32 %v374, %v1197
        %1199 = vmatprep.mubr.bf16.mxu0 %v520
        %1200 = vmatmul.mubr.bf16.gmra.mrb[0].mxu0 %v519
        %v1201 = vpop.f32.mrb[0].mxu0
        %v1202 = vadd.f32 %v370, %v1201
        %v1203 = vpop.f32.mrb[0].mxu0
        %v1204 = vadd.f32 %v374, %v1203
        %v1205 = vpop.f32.mrb[0].mxu0
        %v1206 = vadd.f32 %v370, %v1205
        %v1207 = vpop.f32.mrb[0].mxu0
        %v1208 = vadd.f32 %v374, %v1207
        %1209 = vmatprep.mubr.bf16.mxu0 %v522
        %1210 = vmatmul.mubr.bf16.gmra.mrb[0].mxu0 %v521
        %v1211 = vpop.f32.mrb[0].mxu0
        %v1212 = vadd.f32 %v370, %v1211
        %v1213 = vpop.f32.mrb[0].mxu0
        %v1214 = vadd.f32 %v374, %v1213
        %v1215 = vpop.f32.mrb[0].mxu0
        %v1216 = vadd.f32 %v370, %v1215
        %v1217 = vpop.f32.mrb[0].mxu0
        %v1218 = vadd.f32 %v374, %v1217
        %1219 = vmatprep.mubr.bf16.mxu0 %v524
        %1220 = vmatmul.mubr.bf16.gmra.mrb[0].mxu0 %v523
        %v1221 = vpop.f32.mrb[0].mxu0
        %v1222 = vadd.f32 %v370, %v1221
        %v1223 = vpop.f32.mrb[0].mxu0
        %v1224 = vadd.f32 %v374, %v1223
        %v1225 = vpop.f32.mrb[0].mxu0
        %v1226 = vadd.f32 %v370, %v1225
        %v1227 = vpop.f32.mrb[0].mxu0
        %v1228 = vadd.f32 %v374, %v1227
        %1229 = vdwg.mxu0
        %1230 = vmatprep.subr.bf16.mxu0 %v848
        %1231 = vmatpush1.bf16.msra.mxu0 %v847
        %1232 = vmatprep.subr.bf16.mxu0 %v854
        %1233 = vmatpush1.bf16.msra.mxu0 %v853
        %1234 = vmatprep.subr.bf16.mxu0 %v860
        %1235 = vmatpush1.bf16.msra.mxu0 %v859
        %1236 = vmatprep.subr.bf16.mxu0 %v866
        %1237 = vmatpush1.bf16.msra.mxu0 %v865
        %1238 = vmatprep.subr.bf16.mxu0 %v872
        %1239 = vmatpush1.bf16.msra.mxu0 %v871
        %1240 = vmatprep.subr.bf16.mxu0 %v878
        %1241 = vmatpush1.bf16.msra.mxu0 %v877
        %1242 = vmatprep.subr.bf16.mxu0 %v884
        %1243 = vmatpush1.bf16.msra.mxu0 %v883
        %1244 = vmatprep.subr.bf16.mxu0 %v890
        %1245 = vmatpush1.bf16.msra.mxu0 %v889
        %1246 = vmatprep.subr.bf16.mxu0 %v896
        %1247 = vmatpush1.bf16.msra.mxu0 %v895
        %1248 = vmatprep.subr.bf16.mxu0 %v902
        %1249 = vmatpush1.bf16.msra.mxu0 %v901
        %1250 = vmatprep.subr.bf16.mxu0 %v908
        %1251 = vmatpush1.bf16.msra.mxu0 %v907
        %1252 = vmatprep.subr.bf16.mxu0 %v914
        %1253 = vmatpush1.bf16.msra.mxu0 %v913
        %1254 = vmatprep.subr.bf16.mxu0 %v920
        %1255 = vmatpush1.bf16.msra.mxu0 %v919
        %1256 = vmatprep.subr.bf16.mxu0 %v926
        %1257 = vmatpush1.bf16.msra.mxu0 %v925
        %1258 = vmatprep.subr.bf16.mxu0 %v932
        %1259 = vmatpush1.bf16.msra.mxu0 %v931
        %1260 = vmatprep.subr.bf16.mxu0 %v938
        %1261 = vmatpush1.bf16.msra.mxu0 %v937
        %1262 = vmatprep.mubr.bf16.mxu0 %v494
        %1263 = vmatmul.mubr.bf16.gmra.mrb[0].mxu0 %v493
        %v1264 = vpop.f32.mrb[0].mxu0
        %v1265 = vadd.f32 %v378, %v1264
        %v1266 = vpop.f32.mrb[0].mxu0
        %v1267 = vadd.f32 %v382, %v1266
        %v1268 = vpop.f32.mrb[0].mxu0
        %v1269 = vadd.f32 %v378, %v1268
        %v1270 = vpop.f32.mrb[0].mxu0
        %v1271 = vadd.f32 %v382, %v1270
        %1272 = vmatprep.mubr.bf16.mxu0 %v496
        %1273 = vmatmul.mubr.bf16.gmra.mrb[0].mxu0 %v495
        %v1274 = vpop.f32.mrb[0].mxu0
        %v1275 = vadd.f32 %v378, %v1274
        %v1276 = vpop.f32.mrb[0].mxu0
        %v1277 = vadd.f32 %v382, %v1276
        %v1278 = vpop.f32.mrb[0].mxu0
        %v1279 = vadd.f32 %v378, %v1278
        %v1280 = vpop.f32.mrb[0].mxu0
        %v1281 = vadd.f32 %v382, %v1280
        %1282 = vmatprep.mubr.bf16.mxu0 %v498
        %1283 = vmatmul.mubr.bf16.gmra.mrb[0].mxu0 %v497
        %v1284 = vpop.f32.mrb[0].mxu0
        %v1285 = vadd.f32 %v378, %v1284
        %v1286 = vpop.f32.mrb[0].mxu0
        %v1287 = vadd.f32 %v382, %v1286
        %v1288 = vpop.f32.mrb[0].mxu0
        %v1289 = vadd.f32 %v378, %v1288
        %v1290 = vpop.f32.mrb[0].mxu0
        %v1291 = vadd.f32 %v382, %v1290
        %1292 = vmatprep.mubr.bf16.mxu0 %v500
        %1293 = vmatmul.mubr.bf16.gmra.mrb[0].mxu0 %v499
        %v1294 = vpop.f32.mrb[0].mxu0
        %v1295 = vadd.f32 %v378, %v1294
        %v1296 = vpop.f32.mrb[0].mxu0
        %v1297 = vadd.f32 %v382, %v1296
        %v1298 = vpop.f32.mrb[0].mxu0
        %v1299 = vadd.f32 %v378, %v1298
        %v1300 = vpop.f32.mrb[0].mxu0
        %v1301 = vadd.f32 %v382, %v1300
        %1302 = vmatprep.mubr.bf16.mxu0 %v502
        %1303 = vmatmul.mubr.bf16.gmra.mrb[0].mxu0 %v501
        %v1304 = vpop.f32.mrb[0].mxu0
        %v1305 = vadd.f32 %v378, %v1304
        %v1306 = vpop.f32.mrb[0].mxu0
        %v1307 = vadd.f32 %v382, %v1306
        %v1308 = vpop.f32.mrb[0].mxu0
        %v1309 = vadd.f32 %v378, %v1308
        %v1310 = vpop.f32.mrb[0].mxu0
        %v1311 = vadd.f32 %v382, %v1310
        %1312 = vmatprep.mubr.bf16.mxu0 %v504
        %1313 = vmatmul.mubr.bf16.gmra.mrb[0].mxu0 %v503
        %v1314 = vpop.f32.mrb[0].mxu0
        %v1315 = vadd.f32 %v378, %v1314
        %v1316 = vpop.f32.mrb[0].mxu0
        %v1317 = vadd.f32 %v382, %v1316
        %v1318 = vpop.f32.mrb[0].mxu0
        %v1319 = vadd.f32 %v378, %v1318
        %v1320 = vpop.f32.mrb[0].mxu0
        %v1321 = vadd.f32 %v382, %v1320
        %1322 = vmatprep.mubr.bf16.mxu0 %v506
        %1323 = vmatmul.mubr.bf16.gmra.mrb[0].mxu0 %v505
        %v1324 = vpop.f32.mrb[0].mxu0
        %v1325 = vadd.f32 %v378, %v1324
        %v1326 = vpop.f32.mrb[0].mxu0
        %v1327 = vadd.f32 %v382, %v1326
        %v1328 = vpop.f32.mrb[0].mxu0
        %v1329 = vadd.f32 %v378, %v1328
        %v1330 = vpop.f32.mrb[0].mxu0
        %v1331 = vadd.f32 %v382, %v1330
        %1332 = vmatprep.mubr.bf16.mxu0 %v508
        %1333 = vmatmul.mubr.bf16.gmra.mrb[0].mxu0 %v507
        %v1334 = vpop.f32.mrb[0].mxu0
        %v1335 = vadd.f32 %v378, %v1334
        %v1336 = vpop.f32.mrb[0].mxu0
        %v1337 = vadd.f32 %v382, %v1336
        %v1338 = vpop.f32.mrb[0].mxu0
        %v1339 = vadd.f32 %v378, %v1338
        %v1340 = vpop.f32.mrb[0].mxu0
        %v1341 = vadd.f32 %v382, %v1340
        %1342 = vmatprep.mubr.bf16.mxu0 %v510
        %1343 = vmatmul.mubr.bf16.gmra.mrb[0].mxu0 %v509
        %v1344 = vpop.f32.mrb[0].mxu0
        %v1345 = vadd.f32 %v378, %v1344
        %v1346 = vpop.f32.mrb[0].mxu0
        %v1347 = vadd.f32 %v382, %v1346
        %v1348 = vpop.f32.mrb[0].mxu0
        %v1349 = vadd.f32 %v378, %v1348
        %v1350 = vpop.f32.mrb[0].mxu0
        %v1351 = vadd.f32 %v382, %v1350
        %1352 = vmatprep.mubr.bf16.mxu0 %v512
        %1353 = vmatmul.mubr.bf16.gmra.mrb[0].mxu0 %v511
        %v1354 = vpop.f32.mrb[0].mxu0
        %v1355 = vadd.f32 %v378, %v1354
        %v1356 = vpop.f32.mrb[0].mxu0
        %v1357 = vadd.f32 %v382, %v1356
        %v1358 = vpop.f32.mrb[0].mxu0
        %v1359 = vadd.f32 %v378, %v1358
        %v1360 = vpop.f32.mrb[0].mxu0
        %v1361 = vadd.f32 %v382, %v1360
        %1362 = vmatprep.mubr.bf16.mxu0 %v514
        %1363 = vmatmul.mubr.bf16.gmra.mrb[0].mxu0 %v513
        %v1364 = vpop.f32.mrb[0].mxu0
        %v1365 = vadd.f32 %v378, %v1364
        %v1366 = vpop.f32.mrb[0].mxu0
        %v1367 = vadd.f32 %v382, %v1366
        %v1368 = vpop.f32.mrb[0].mxu0
        %v1369 = vadd.f32 %v378, %v1368
        %v1370 = vpop.f32.mrb[0].mxu0
        %v1371 = vadd.f32 %v382, %v1370
        %1372 = vmatprep.mubr.bf16.mxu0 %v516
        %1373 = vmatmul.mubr.bf16.gmra.mrb[0].mxu0 %v515
        %v1374 = vpop.f32.mrb[0].mxu0
        %v1375 = vadd.f32 %v378, %v1374
        %v1376 = vpop.f32.mrb[0].mxu0
        %v1377 = vadd.f32 %v382, %v1376
        %v1378 = vpop.f32.mrb[0].mxu0
        %v1379 = vadd.f32 %v378, %v1378
        %v1380 = vpop.f32.mrb[0].mxu0
        %v1381 = vadd.f32 %v382, %v1380
        %1382 = vmatprep.mubr.bf16.mxu0 %v518
        %1383 = vmatmul.mubr.bf16.gmra.mrb[0].mxu0 %v517
        %v1384 = vpop.f32.mrb[0].mxu0
        %v1385 = vadd.f32 %v378, %v1384
        %v1386 = vpop.f32.mrb[0].mxu0
        %v1387 = vadd.f32 %v382, %v1386
        %v1388 = vpop.f32.mrb[0].mxu0
        %v1389 = vadd.f32 %v378, %v1388
        %v1390 = vpop.f32.mrb[0].mxu0
        %v1391 = vadd.f32 %v382, %v1390
        %1392 = vmatprep.mubr.bf16.mxu0 %v520
        %1393 = vmatmul.mubr.bf16.gmra.mrb[0].mxu0 %v519
        %v1394 = vpop.f32.mrb[0].mxu0
        %v1395 = vadd.f32 %v378, %v1394
        %v1396 = vpop.f32.mrb[0].mxu0
        %v1397 = vadd.f32 %v382, %v1396
        %v1398 = vpop.f32.mrb[0].mxu0
        %v1399 = vadd.f32 %v378, %v1398
        %v1400 = vpop.f32.mrb[0].mxu0
        %v1401 = vadd.f32 %v382, %v1400
        %1402 = vmatprep.mubr.bf16.mxu0 %v522
        %1403 = vmatmul.mubr.bf16.gmra.mrb[0].mxu0 %v521
        %v1404 = vpop.f32.mrb[0].mxu0
        %v1405 = vadd.f32 %v378, %v1404
        %v1406 = vpop.f32.mrb[0].mxu0
        %v1407 = vadd.f32 %v382, %v1406
        %v1408 = vpop.f32.mrb[0].mxu0
        %v1409 = vadd.f32 %v378, %v1408
        %v1410 = vpop.f32.mrb[0].mxu0
        %v1411 = vadd.f32 %v382, %v1410
        %1412 = vmatprep.mubr.bf16.mxu0 %v524
        %1413 = vmatmul.mubr.bf16.gmra.mrb[0].mxu0 %v523
        %v1414 = vpop.f32.mrb[0].mxu0
        %v1415 = vadd.f32 %v378, %v1414
        %v1416 = vpop.f32.mrb[0].mxu0
        %v1417 = vadd.f32 %v382, %v1416
        %v1418 = vpop.f32.mrb[0].mxu0
        %v1419 = vadd.f32 %v378, %v1418
        %v1420 = vpop.f32.mrb[0].mxu0
        %v1421 = vadd.f32 %v382, %v1420
        %1422 = vdwg.mxu0
        %1423 = vmatprep.subr.bf16.mxu0 %v850
        %1424 = vmatpush1.bf16.msra.mxu0 %v849
        %1425 = vmatprep.subr.bf16.mxu0 %v856
        %1426 = vmatpush1.bf16.msra.mxu0 %v855
        %1427 = vmatprep.subr.bf16.mxu0 %v862
        %1428 = vmatpush1.bf16.msra.mxu0 %v861
        %1429 = vmatprep.subr.bf16.mxu0 %v868
        %1430 = vmatpush1.bf16.msra.mxu0 %v867
        %1431 = vmatprep.subr.bf16.mxu0 %v874
        %1432 = vmatpush1.bf16.msra.mxu0 %v873
        %1433 = vmatprep.subr.bf16.mxu0 %v880
        %1434 = vmatpush1.bf16.msra.mxu0 %v879
        %1435 = vmatprep.subr.bf16.mxu0 %v886
        %1436 = vmatpush1.bf16.msra.mxu0 %v885
        %1437 = vmatprep.subr.bf16.mxu0 %v892
        %1438 = vmatpush1.bf16.msra.mxu0 %v891
        %1439 = vmatprep.subr.bf16.mxu0 %v898
        %1440 = vmatpush1.bf16.msra.mxu0 %v897
        %1441 = vmatprep.subr.bf16.mxu0 %v904
        %1442 = vmatpush1.bf16.msra.mxu0 %v903
        %1443 = vmatprep.subr.bf16.mxu0 %v910
        %1444 = vmatpush1.bf16.msra.mxu0 %v909
        %1445 = vmatprep.subr.bf16.mxu0 %v916
        %1446 = vmatpush1.bf16.msra.mxu0 %v915
        %1447 = vmatprep.subr.bf16.mxu0 %v922
        %1448 = vmatpush1.bf16.msra.mxu0 %v921
        %1449 = vmatprep.subr.bf16.mxu0 %v928
        %1450 = vmatpush1.bf16.msra.mxu0 %v927
        %1451 = vmatprep.subr.bf16.mxu0 %v934
        %1452 = vmatpush1.bf16.msra.mxu0 %v933
        %1453 = vmatprep.subr.bf16.mxu0 %v940
        %1454 = vmatpush1.bf16.msra.mxu0 %v939
        %1455 = vmatprep.mubr.bf16.mxu0 %v494
        %1456 = vmatmul.mubr.bf16.gmra.mrb[0].mxu0 %v493
        %v1457 = vpop.f32.mrb[0].mxu0
        %v1458 = vadd.f32 %v386, %v1457
        %v1459 = vpop.f32.mrb[0].mxu0
        %v1460 = vadd.f32 %v390, %v1459
        %v1461 = vpop.f32.mrb[0].mxu0
        %v1462 = vadd.f32 %v386, %v1461
        %v1463 = vpop.f32.mrb[0].mxu0
        %v1464 = vadd.f32 %v390, %v1463
        %1465 = vmatprep.mubr.bf16.mxu0 %v496
        %1466 = vmatmul.mubr.bf16.gmra.mrb[0].mxu0 %v495
        %v1467 = vpop.f32.mrb[0].mxu0
        %v1468 = vadd.f32 %v386, %v1467
        %v1469 = vpop.f32.mrb[0].mxu0
        %v1470 = vadd.f32 %v390, %v1469
        %v1471 = vpop.f32.mrb[0].mxu0
        %v1472 = vadd.f32 %v386, %v1471
        %v1473 = vpop.f32.mrb[0].mxu0
        %v1474 = vadd.f32 %v390, %v1473
        %1475 = vmatprep.mubr.bf16.mxu0 %v498
        %1476 = vmatmul.mubr.bf16.gmra.mrb[0].mxu0 %v497
        %v1477 = vpop.f32.mrb[0].mxu0
        %v1478 = vadd.f32 %v386, %v1477
        %v1479 = vpop.f32.mrb[0].mxu0
        %v1480 = vadd.f32 %v390, %v1479
        %v1481 = vpop.f32.mrb[0].mxu0
        %v1482 = vadd.f32 %v386, %v1481
        %v1483 = vpop.f32.mrb[0].mxu0
        %v1484 = vadd.f32 %v390, %v1483
        %1485 = vmatprep.mubr.bf16.mxu0 %v500
        %1486 = vmatmul.mubr.bf16.gmra.mrb[0].mxu0 %v499
        %v1487 = vpop.f32.mrb[0].mxu0
        %v1488 = vadd.f32 %v386, %v1487
        %v1489 = vpop.f32.mrb[0].mxu0
        %v1490 = vadd.f32 %v390, %v1489
        %v1491 = vpop.f32.mrb[0].mxu0
        %v1492 = vadd.f32 %v386, %v1491
        %v1493 = vpop.f32.mrb[0].mxu0
        %v1494 = vadd.f32 %v390, %v1493
        %1495 = vmatprep.mubr.bf16.mxu0 %v502
        %1496 = vmatmul.mubr.bf16.gmra.mrb[0].mxu0 %v501
        %v1497 = vpop.f32.mrb[0].mxu0
        %v1498 = vadd.f32 %v386, %v1497
        %v1499 = vpop.f32.mrb[0].mxu0
        %v1500 = vadd.f32 %v390, %v1499
        %v1501 = vpop.f32.mrb[0].mxu0
        %v1502 = vadd.f32 %v386, %v1501
        %v1503 = vpop.f32.mrb[0].mxu0
        %v1504 = vadd.f32 %v390, %v1503
        %1505 = vmatprep.mubr.bf16.mxu0 %v504
        %1506 = vmatmul.mubr.bf16.gmra.mrb[0].mxu0 %v503
        %v1507 = vpop.f32.mrb[0].mxu0
        %v1508 = vadd.f32 %v386, %v1507
        %v1509 = vpop.f32.mrb[0].mxu0
        %v1510 = vadd.f32 %v390, %v1509
        %v1511 = vpop.f32.mrb[0].mxu0
        %v1512 = vadd.f32 %v386, %v1511
        %v1513 = vpop.f32.mrb[0].mxu0
        %v1514 = vadd.f32 %v390, %v1513
        %1515 = vmatprep.mubr.bf16.mxu0 %v506
        %1516 = vmatmul.mubr.bf16.gmra.mrb[0].mxu0 %v505
        %v1517 = vpop.f32.mrb[0].mxu0
        %v1518 = vadd.f32 %v386, %v1517
        %v1519 = vpop.f32.mrb[0].mxu0
        %v1520 = vadd.f32 %v390, %v1519
        %v1521 = vpop.f32.mrb[0].mxu0
        %v1522 = vadd.f32 %v386, %v1521
        %v1523 = vpop.f32.mrb[0].mxu0
        %v1524 = vadd.f32 %v390, %v1523
        %1525 = vmatprep.mubr.bf16.mxu0 %v508
        %1526 = vmatmul.mubr.bf16.gmra.mrb[0].mxu0 %v507
        %v1527 = vpop.f32.mrb[0].mxu0
        %v1528 = vadd.f32 %v386, %v1527
        %v1529 = vpop.f32.mrb[0].mxu0
        %v1530 = vadd.f32 %v390, %v1529
        %v1531 = vpop.f32.mrb[0].mxu0
        %v1532 = vadd.f32 %v386, %v1531
        %v1533 = vpop.f32.mrb[0].mxu0
        %v1534 = vadd.f32 %v390, %v1533
        %1535 = vmatprep.mubr.bf16.mxu0 %v510
        %1536 = vmatmul.mubr.bf16.gmra.mrb[0].mxu0 %v509
        %v1537 = vpop.f32.mrb[0].mxu0
        %v1538 = vadd.f32 %v386, %v1537
        %v1539 = vpop.f32.mrb[0].mxu0
        %v1540 = vadd.f32 %v390, %v1539
        %v1541 = vpop.f32.mrb[0].mxu0
        %v1542 = vadd.f32 %v386, %v1541
        %v1543 = vpop.f32.mrb[0].mxu0
        %v1544 = vadd.f32 %v390, %v1543
        %1545 = vmatprep.mubr.bf16.mxu0 %v512
        %1546 = vmatmul.mubr.bf16.gmra.mrb[0].mxu0 %v511
        %v1547 = vpop.f32.mrb[0].mxu0
        %v1548 = vadd.f32 %v386, %v1547
        %v1549 = vpop.f32.mrb[0].mxu0
        %v1550 = vadd.f32 %v390, %v1549
        %v1551 = vpop.f32.mrb[0].mxu0
        %v1552 = vadd.f32 %v386, %v1551
        %v1553 = vpop.f32.mrb[0].mxu0
        %v1554 = vadd.f32 %v390, %v1553
        %1555 = vmatprep.mubr.bf16.mxu0 %v514
        %1556 = vmatmul.mubr.bf16.gmra.mrb[0].mxu0 %v513
        %v1557 = vpop.f32.mrb[0].mxu0
        %v1558 = vadd.f32 %v386, %v1557
        %v1559 = vpop.f32.mrb[0].mxu0
        %v1560 = vadd.f32 %v390, %v1559
        %v1561 = vpop.f32.mrb[0].mxu0
        %v1562 = vadd.f32 %v386, %v1561
        %v1563 = vpop.f32.mrb[0].mxu0
        %v1564 = vadd.f32 %v390, %v1563
        %1565 = vmatprep.mubr.bf16.mxu0 %v516
        %1566 = vmatmul.mubr.bf16.gmra.mrb[0].mxu0 %v515
        %v1567 = vpop.f32.mrb[0].mxu0
        %v1568 = vadd.f32 %v386, %v1567
        %v1569 = vpop.f32.mrb[0].mxu0
        %v1570 = vadd.f32 %v390, %v1569
        %v1571 = vpop.f32.mrb[0].mxu0
        %v1572 = vadd.f32 %v386, %v1571
        %v1573 = vpop.f32.mrb[0].mxu0
        %v1574 = vadd.f32 %v390, %v1573
        %1575 = vmatprep.mubr.bf16.mxu0 %v518
        %1576 = vmatmul.mubr.bf16.gmra.mrb[0].mxu0 %v517
        %v1577 = vpop.f32.mrb[0].mxu0
        %v1578 = vadd.f32 %v386, %v1577
        %v1579 = vpop.f32.mrb[0].mxu0
        %v1580 = vadd.f32 %v390, %v1579
        %v1581 = vpop.f32.mrb[0].mxu0
        %v1582 = vadd.f32 %v386, %v1581
        %v1583 = vpop.f32.mrb[0].mxu0
        %v1584 = vadd.f32 %v390, %v1583
        %1585 = vmatprep.mubr.bf16.mxu0 %v520
        %1586 = vmatmul.mubr.bf16.gmra.mrb[0].mxu0 %v519
        %v1587 = vpop.f32.mrb[0].mxu0
        %v1588 = vadd.f32 %v386, %v1587
        %v1589 = vpop.f32.mrb[0].mxu0
        %v1590 = vadd.f32 %v390, %v1589
        %v1591 = vpop.f32.mrb[0].mxu0
        %v1592 = vadd.f32 %v386, %v1591
        %v1593 = vpop.f32.mrb[0].mxu0
        %v1594 = vadd.f32 %v390, %v1593
        %1595 = vmatprep.mubr.bf16.mxu0 %v522
        %1596 = vmatmul.mubr.bf16.gmra.mrb[0].mxu0 %v521
        %v1597 = vpop.f32.mrb[0].mxu0
        %v1598 = vadd.f32 %v386, %v1597
        %v1599 = vpop.f32.mrb[0].mxu0
        %v1600 = vadd.f32 %v390, %v1599
        %v1601 = vpop.f32.mrb[0].mxu0
        %v1602 = vadd.f32 %v386, %v1601
        %v1603 = vpop.f32.mrb[0].mxu0
        %v1604 = vadd.f32 %v390, %v1603
        %1605 = vmatprep.mubr.bf16.mxu0 %v524
        %1606 = vmatmul.mubr.bf16.gmra.mrb[0].mxu0 %v523
        %v1607 = vpop.f32.mrb[0].mxu0
        %v1608 = vadd.f32 %v386, %v1607
        %v1609 = vpop.f32.mrb[0].mxu0
        %v1610 = vadd.f32 %v390, %v1609
        %v1611 = vpop.f32.mrb[0].mxu0
        %v1612 = vadd.f32 %v386, %v1611
        %v1613 = vpop.f32.mrb[0].mxu0
        %v1614 = vadd.f32 %v390, %v1613
        %1615 = vdwg.mxu0
        %v1616 = vpack.c.bf16 %v1076, %v1072
        %v1617 = vpack.c.bf16 %v1078, %v1074
        %v1618 = vpack.c.bf16 %v1269, %v1265
        %v1619 = vpack.c.bf16 %v1271, %v1267
        %v1620 = vpack.c.bf16 %v1462, %v1458
        %v1621 = vpack.c.bf16 %v1464, %v1460
        %v1622 = vpack.c.bf16 %v1086, %v1082
        %v1623 = vpack.c.bf16 %v1088, %v1084
        %v1624 = vpack.c.bf16 %v1279, %v1275
        %v1625 = vpack.c.bf16 %v1281, %v1277
        %v1626 = vpack.c.bf16 %v1472, %v1468
        %v1627 = vpack.c.bf16 %v1474, %v1470
        %v1628 = vpack.c.bf16 %v1096, %v1092
        %v1629 = vpack.c.bf16 %v1098, %v1094
        %v1630 = vpack.c.bf16 %v1289, %v1285
        %v1631 = vpack.c.bf16 %v1291, %v1287
        %v1632 = vpack.c.bf16 %v1482, %v1478
        %v1633 = vpack.c.bf16 %v1484, %v1480
        %v1634 = vpack.c.bf16 %v1106, %v1102
        %v1635 = vpack.c.bf16 %v1108, %v1104
        %v1636 = vpack.c.bf16 %v1299, %v1295
        %v1637 = vpack.c.bf16 %v1301, %v1297
        %v1638 = vpack.c.bf16 %v1492, %v1488
        %v1639 = vpack.c.bf16 %v1494, %v1490
        %v1640 = vpack.c.bf16 %v1116, %v1112
        %v1641 = vpack.c.bf16 %v1118, %v1114
        %v1642 = vpack.c.bf16 %v1309, %v1305
        %v1643 = vpack.c.bf16 %v1311, %v1307
        %v1644 = vpack.c.bf16 %v1502, %v1498
        %v1645 = vpack.c.bf16 %v1504, %v1500
        %v1646 = vpack.c.bf16 %v1126, %v1122
        %v1647 = vpack.c.bf16 %v1128, %v1124
        %v1648 = vpack.c.bf16 %v1319, %v1315
        %v1649 = vpack.c.bf16 %v1321, %v1317
        %v1650 = vpack.c.bf16 %v1512, %v1508
        %v1651 = vpack.c.bf16 %v1514, %v1510
        %v1652 = vpack.c.bf16 %v1136, %v1132
        %v1653 = vpack.c.bf16 %v1138, %v1134
        %v1654 = vpack.c.bf16 %v1329, %v1325
        %v1655 = vpack.c.bf16 %v1331, %v1327
        %v1656 = vpack.c.bf16 %v1522, %v1518
        %v1657 = vpack.c.bf16 %v1524, %v1520
        %v1658 = vpack.c.bf16 %v1146, %v1142
        %v1659 = vpack.c.bf16 %v1148, %v1144
        %v1660 = vpack.c.bf16 %v1339, %v1335
        %v1661 = vpack.c.bf16 %v1341, %v1337
        %v1662 = vpack.c.bf16 %v1532, %v1528
        %v1663 = vpack.c.bf16 %v1534, %v1530
        %v1664 = vpack.c.bf16 %v1156, %v1152
        %v1665 = vpack.c.bf16 %v1158, %v1154
        %v1666 = vpack.c.bf16 %v1349, %v1345
        %v1667 = vpack.c.bf16 %v1351, %v1347
        %v1668 = vpack.c.bf16 %v1542, %v1538
        %v1669 = vpack.c.bf16 %v1544, %v1540
        %v1670 = vpack.c.bf16 %v1166, %v1162
        %v1671 = vpack.c.bf16 %v1168, %v1164
        %v1672 = vpack.c.bf16 %v1359, %v1355
        %v1673 = vpack.c.bf16 %v1361, %v1357
        %v1674 = vpack.c.bf16 %v1552, %v1548
        %v1675 = vpack.c.bf16 %v1554, %v1550
        %v1676 = vpack.c.bf16 %v1176, %v1172
        %v1677 = vpack.c.bf16 %v1178, %v1174
        %v1678 = vpack.c.bf16 %v1369, %v1365
        %v1679 = vpack.c.bf16 %v1371, %v1367
        %v1680 = vpack.c.bf16 %v1562, %v1558
        %v1681 = vpack.c.bf16 %v1564, %v1560
        %v1682 = vpack.c.bf16 %v1186, %v1182
        %v1683 = vpack.c.bf16 %v1188, %v1184
        %v1684 = vpack.c.bf16 %v1379, %v1375
        %v1685 = vpack.c.bf16 %v1381, %v1377
        %v1686 = vpack.c.bf16 %v1572, %v1568
        %v1687 = vpack.c.bf16 %v1574, %v1570
        %v1688 = vpack.c.bf16 %v1196, %v1192
        %v1689 = vpack.c.bf16 %v1198, %v1194
        %v1690 = vpack.c.bf16 %v1389, %v1385
        %v1691 = vpack.c.bf16 %v1391, %v1387
        %v1692 = vpack.c.bf16 %v1582, %v1578
        %v1693 = vpack.c.bf16 %v1584, %v1580
        %v1694 = vpack.c.bf16 %v1206, %v1202
        %v1695 = vpack.c.bf16 %v1208, %v1204
        %v1696 = vpack.c.bf16 %v1399, %v1395
        %v1697 = vpack.c.bf16 %v1401, %v1397
        %v1698 = vpack.c.bf16 %v1592, %v1588
        %v1699 = vpack.c.bf16 %v1594, %v1590
        %v1700 = vpack.c.bf16 %v1216, %v1212
        %v1701 = vpack.c.bf16 %v1218, %v1214
        %v1702 = vpack.c.bf16 %v1409, %v1405
        %v1703 = vpack.c.bf16 %v1411, %v1407
        %v1704 = vpack.c.bf16 %v1602, %v1598
        %v1705 = vpack.c.bf16 %v1604, %v1600
        %v1706 = vpack.c.bf16 %v1226, %v1222
        %v1707 = vpack.c.bf16 %v1228, %v1224
        %v1708 = vpack.c.bf16 %v1419, %v1415
        %v1709 = vpack.c.bf16 %v1421, %v1417
        %v1710 = vpack.c.bf16 %v1612, %v1608
        %v1711 = vpack.c.bf16 %v1614, %v1610
        %v1744 = vunpack.c.l.b16 %v1616
        %v1745 = vunpack.c.l.b16 %v1617
        %v1746 = vunpack.c.h.b16 %v1616
        %v1747 = vunpack.c.h.b16 %v1617
        %v1748 = vunpack.c.l.b16 %v1622
        %v1749 = vunpack.c.l.b16 %v1623
        %v1750 = vunpack.c.h.b16 %v1622
        %v1751 = vunpack.c.h.b16 %v1623
        %v1752 = vunpack.c.l.b16 %v1628
        %v1753 = vunpack.c.l.b16 %v1629
        %v1754 = vunpack.c.h.b16 %v1628
        %v1755 = vunpack.c.h.b16 %v1629
        %v1756 = vunpack.c.l.b16 %v1634
        %v1757 = vunpack.c.l.b16 %v1635
        %v1758 = vunpack.c.h.b16 %v1634
        %v1759 = vunpack.c.h.b16 %v1635
        %v1760 = vunpack.c.l.b16 %v1640
        %v1761 = vunpack.c.l.b16 %v1641
        %v1762 = vunpack.c.h.b16 %v1640
        %v1763 = vunpack.c.h.b16 %v1641
        %v1764 = vunpack.c.l.b16 %v1646
        %v1765 = vunpack.c.l.b16 %v1647
        %v1766 = vunpack.c.h.b16 %v1646
        %v1767 = vunpack.c.h.b16 %v1647
        %v1768 = vunpack.c.l.b16 %v1652
        %v1769 = vunpack.c.l.b16 %v1653
        %v1770 = vunpack.c.h.b16 %v1652
        %v1771 = vunpack.c.h.b16 %v1653
        %v1772 = vunpack.c.l.b16 %v1658
        %v1773 = vunpack.c.l.b16 %v1659
        %v1774 = vunpack.c.h.b16 %v1658
        %v1775 = vunpack.c.h.b16 %v1659
        %v1776 = vunpack.c.l.b16 %v1664
        %v1777 = vunpack.c.l.b16 %v1665
        %v1778 = vunpack.c.h.b16 %v1664
        %v1779 = vunpack.c.h.b16 %v1665
        %v1780 = vunpack.c.l.b16 %v1670
        %v1781 = vunpack.c.l.b16 %v1671
        %v1782 = vunpack.c.h.b16 %v1670
        %v1783 = vunpack.c.h.b16 %v1671
        %v1784 = vunpack.c.l.b16 %v1676
        %v1785 = vunpack.c.l.b16 %v1677
        %v1786 = vunpack.c.h.b16 %v1676
        %v1787 = vunpack.c.h.b16 %v1677
        %v1788 = vunpack.c.l.b16 %v1682
        %v1789 = vunpack.c.l.b16 %v1683
        %v1790 = vunpack.c.h.b16 %v1682
        %v1791 = vunpack.c.h.b16 %v1683
        %v1792 = vunpack.c.l.b16 %v1688
        %v1793 = vunpack.c.l.b16 %v1689
        %v1794 = vunpack.c.h.b16 %v1688
        %v1795 = vunpack.c.h.b16 %v1689
        %v1796 = vunpack.c.l.b16 %v1694
        %v1797 = vunpack.c.l.b16 %v1695
        %v1798 = vunpack.c.h.b16 %v1694
        %v1799 = vunpack.c.h.b16 %v1695
        %v1800 = vunpack.c.l.b16 %v1700
        %v1801 = vunpack.c.l.b16 %v1701
        %v1802 = vunpack.c.h.b16 %v1700
        %v1803 = vunpack.c.h.b16 %v1701
        %v1804 = vunpack.c.l.b16 %v1706
        %v1805 = vunpack.c.l.b16 %v1707
        %v1806 = vunpack.c.h.b16 %v1706
        %v1807 = vunpack.c.h.b16 %v1707
        %v1808 = vpack.c.b16 %v1745, %v1744
        %v1809 = vpack.c.b16 %v1747, %v1746
        %v1810 = vpack.c.b16 %v1749, %v1748
        %v1811 = vpack.c.b16 %v1751, %v1750
        %v1812 = vpack.c.b16 %v1753, %v1752
        %v1813 = vpack.c.b16 %v1755, %v1754
        %v1814 = vpack.c.b16 %v1757, %v1756
        %v1815 = vpack.c.b16 %v1759, %v1758
        %v1816 = vpack.c.b16 %v1761, %v1760
        %v1817 = vpack.c.b16 %v1763, %v1762
        %v1818 = vpack.c.b16 %v1765, %v1764
        %v1819 = vpack.c.b16 %v1767, %v1766
        %v1820 = vpack.c.b16 %v1769, %v1768
        %v1821 = vpack.c.b16 %v1771, %v1770
        %v1822 = vpack.c.b16 %v1773, %v1772
        %v1823 = vpack.c.b16 %v1775, %v1774
        %v1824 = vpack.c.b16 %v1777, %v1776
        %v1825 = vpack.c.b16 %v1779, %v1778
        %v1826 = vpack.c.b16 %v1781, %v1780
        %v1827 = vpack.c.b16 %v1783, %v1782
        %v1828 = vpack.c.b16 %v1785, %v1784
        %v1829 = vpack.c.b16 %v1787, %v1786
        %v1830 = vpack.c.b16 %v1789, %v1788
        %v1831 = vpack.c.b16 %v1791, %v1790
        %v1832 = vpack.c.b16 %v1793, %v1792
        %v1833 = vpack.c.b16 %v1795, %v1794
        %v1834 = vpack.c.b16 %v1797, %v1796
        %v1835 = vpack.c.b16 %v1799, %v1798
        %v1836 = vpack.c.b16 %v1801, %v1800
        %v1837 = vpack.c.b16 %v1803, %v1802
        %v1838 = vpack.c.b16 %v1805, %v1804
        %v1839 = vpack.c.b16 %v1807, %v1806
        %1872 = vst [vmem:[%s234] sm:$0xff] %v1808
        %1873 = vst [vmem:[%s234 + $0x8] sm:$0xff] %v1809
        %1874 = vst [vmem:[%s234 + $0x10] sm:$0xff] %v1810
        %1875 = vst [vmem:[%s234 + $0x18] sm:$0xff] %v1811
        %1876 = vst [vmem:[%s234 + $0x20] sm:$0xff] %v1812
        %1877 = vst [vmem:[%s234 + $0x28] sm:$0xff] %v1813
        %1878 = vst [vmem:[%s234 + $0x30] sm:$0xff] %v1814
        %1879 = vst [vmem:[%s234 + $0x38] sm:$0xff] %v1815
        %1880 = vst [vmem:[%s234 + $0x40] sm:$0xff] %v1816
        %1881 = vst [vmem:[%s234 + $0x48] sm:$0xff] %v1817
        %1882 = vst [vmem:[%s234 + $0x50] sm:$0xff] %v1818
        %1883 = vst [vmem:[%s234 + $0x58] sm:$0xff] %v1819
        %1884 = vst [vmem:[%s234 + $0x60] sm:$0xff] %v1820
        %1885 = vst [vmem:[%s234 + $0x68] sm:$0xff] %v1821
        %1886 = vst [vmem:[%s234 + $0x70] sm:$0xff] %v1822
        %1887 = vst [vmem:[%s234 + $0x78] sm:$0xff] %v1823
        %1888 = vst [vmem:[%s234 + $0x80] sm:$0xff] %v1824
        %1889 = vst [vmem:[%s234 + $0x88] sm:$0xff] %v1825
        %1890 = vst [vmem:[%s234 + $0x90] sm:$0xff] %v1826
        %1891 = vst [vmem:[%s234 + $0x98] sm:$0xff] %v1827
        %1892 = vst [vmem:[%s234 + $0xa0] sm:$0xff] %v1828
        %1893 = vst [vmem:[%s234 + $0xa8] sm:$0xff] %v1829
        %1894 = vst [vmem:[%s234 + $0xb0] sm:$0xff] %v1830
        %1895 = vst [vmem:[%s234 + $0xb8] sm:$0xff] %v1831
        %1896 = vst [vmem:[%s234 + $0xc0] sm:$0xff] %v1832
        %1897 = vst [vmem:[%s234 + $0xc8] sm:$0xff] %v1833
        %1898 = vst [vmem:[%s234 + $0xd0] sm:$0xff] %v1834
        %1899 = vst [vmem:[%s234 + $0xd8] sm:$0xff] %v1835
        %1900 = vst [vmem:[%s234 + $0xe0] sm:$0xff] %v1836
        %1901 = vst [vmem:[%s234 + $0xe8] sm:$0xff] %v1837
        %1902 = vst [vmem:[%s234 + $0xf0] sm:$0xff] %v1838
        %1903 = vst [vmem:[%s234 + $0xf8] sm:$0xff] %v1839
        %v1936 = vunpack.c.l.b16 %v1618
        %v1937 = vunpack.c.l.b16 %v1619
        %v1938 = vunpack.c.h.b16 %v1618
        %v1939 = vunpack.c.h.b16 %v1619
        %v1940 = vunpack.c.l.b16 %v1624
        %v1941 = vunpack.c.l.b16 %v1625
        %v1942 = vunpack.c.h.b16 %v1624
        %v1943 = vunpack.c.h.b16 %v1625
        %v1944 = vunpack.c.l.b16 %v1630
        %v1945 = vunpack.c.l.b16 %v1631
        %v1946 = vunpack.c.h.b16 %v1630
        %v1947 = vunpack.c.h.b16 %v1631
        %v1948 = vunpack.c.l.b16 %v1636
        %v1949 = vunpack.c.l.b16 %v1637
        %v1950 = vunpack.c.h.b16 %v1636
        %v1951 = vunpack.c.h.b16 %v1637
        %v1952 = vunpack.c.l.b16 %v1642
        %v1953 = vunpack.c.l.b16 %v1643
        %v1954 = vunpack.c.h.b16 %v1642
        %v1955 = vunpack.c.h.b16 %v1643
        %v1956 = vunpack.c.l.b16 %v1648
        %v1957 = vunpack.c.l.b16 %v1649
        %v1958 = vunpack.c.h.b16 %v1648
        %v1959 = vunpack.c.h.b16 %v1649
        %v1960 = vunpack.c.l.b16 %v1654
        %v1961 = vunpack.c.l.b16 %v1655
        %v1962 = vunpack.c.h.b16 %v1654
        %v1963 = vunpack.c.h.b16 %v1655
        %v1964 = vunpack.c.l.b16 %v1660
        %v1965 = vunpack.c.l.b16 %v1661
        %v1966 = vunpack.c.h.b16 %v1660
        %v1967 = vunpack.c.h.b16 %v1661
        %v1968 = vunpack.c.l.b16 %v1666
        %v1969 = vunpack.c.l.b16 %v1667
        %v1970 = vunpack.c.h.b16 %v1666
        %v1971 = vunpack.c.h.b16 %v1667
        %v1972 = vunpack.c.l.b16 %v1672
        %v1973 = vunpack.c.l.b16 %v1673
        %v1974 = vunpack.c.h.b16 %v1672
        %v1975 = vunpack.c.h.b16 %v1673
        %v1976 = vunpack.c.l.b16 %v1678
        %v1977 = vunpack.c.l.b16 %v1679
        %v1978 = vunpack.c.h.b16 %v1678
        %v1979 = vunpack.c.h.b16 %v1679
        %v1980 = vunpack.c.l.b16 %v1684
        %v1981 = vunpack.c.l.b16 %v1685
        %v1982 = vunpack.c.h.b16 %v1684
        %v1983 = vunpack.c.h.b16 %v1685
        %v1984 = vunpack.c.l.b16 %v1690
        %v1985 = vunpack.c.l.b16 %v1691
        %v1986 = vunpack.c.h.b16 %v1690
        %v1987 = vunpack.c.h.b16 %v1691
        %v1988 = vunpack.c.l.b16 %v1696
        %v1989 = vunpack.c.l.b16 %v1697
        %v1990 = vunpack.c.h.b16 %v1696
        %v1991 = vunpack.c.h.b16 %v1697
        %v1992 = vunpack.c.l.b16 %v1702
        %v1993 = vunpack.c.l.b16 %v1703
        %v1994 = vunpack.c.h.b16 %v1702
        %v1995 = vunpack.c.h.b16 %v1703
        %v1996 = vunpack.c.l.b16 %v1708
        %v1997 = vunpack.c.l.b16 %v1709
        %v1998 = vunpack.c.h.b16 %v1708
        %v1999 = vunpack.c.h.b16 %v1709
        %v2000 = vpack.c.b16 %v1937, %v1936
        %v2001 = vpack.c.b16 %v1939, %v1938
        %v2002 = vpack.c.b16 %v1941, %v1940
        %v2003 = vpack.c.b16 %v1943, %v1942
        %v2004 = vpack.c.b16 %v1945, %v1944
        %v2005 = vpack.c.b16 %v1947, %v1946
        %v2006 = vpack.c.b16 %v1949, %v1948
        %v2007 = vpack.c.b16 %v1951, %v1950
        %v2008 = vpack.c.b16 %v1953, %v1952
        %v2009 = vpack.c.b16 %v1955, %v1954
        %v2010 = vpack.c.b16 %v1957, %v1956
        %v2011 = vpack.c.b16 %v1959, %v1958
        %v2012 = vpack.c.b16 %v1961, %v1960
        %v2013 = vpack.c.b16 %v1963, %v1962
        %v2014 = vpack.c.b16 %v1965, %v1964
        %v2015 = vpack.c.b16 %v1967, %v1966
        %v2016 = vpack.c.b16 %v1969, %v1968
        %v2017 = vpack.c.b16 %v1971, %v1970
        %v2018 = vpack.c.b16 %v1973, %v1972
        %v2019 = vpack.c.b16 %v1975, %v1974
        %v2020 = vpack.c.b16 %v1977, %v1976
        %v2021 = vpack.c.b16 %v1979, %v1978
        %v2022 = vpack.c.b16 %v1981, %v1980
        %v2023 = vpack.c.b16 %v1983, %v1982
        %v2024 = vpack.c.b16 %v1985, %v1984
        %v2025 = vpack.c.b16 %v1987, %v1986
        %v2026 = vpack.c.b16 %v1989, %v1988
        %v2027 = vpack.c.b16 %v1991, %v1990
        %v2028 = vpack.c.b16 %v1993, %v1992
        %v2029 = vpack.c.b16 %v1995, %v1994
        %v2030 = vpack.c.b16 %v1997, %v1996
        %v2031 = vpack.c.b16 %v1999, %v1998
        %s2064 = scalar_lea.vmem %s234, 256 [#allocation8]
        %2065 = vst [vmem:[%s2064] sm:$0xff] %v2000
        %2066 = vst [vmem:[%s2064 + $0x8] sm:$0xff] %v2001
        %2067 = vst [vmem:[%s2064 + $0x10] sm:$0xff] %v2002
        %2068 = vst [vmem:[%s2064 + $0x18] sm:$0xff] %v2003
        %2069 = vst [vmem:[%s2064 + $0x20] sm:$0xff] %v2004
        %2070 = vst [vmem:[%s2064 + $0x28] sm:$0xff] %v2005
        %2071 = vst [vmem:[%s2064 + $0x30] sm:$0xff] %v2006
        %2072 = vst [vmem:[%s2064 + $0x38] sm:$0xff] %v2007
        %2073 = vst [vmem:[%s2064 + $0x40] sm:$0xff] %v2008
        %2074 = vst [vmem:[%s2064 + $0x48] sm:$0xff] %v2009
        %2075 = vst [vmem:[%s2064 + $0x50] sm:$0xff] %v2010
        %2076 = vst [vmem:[%s2064 + $0x58] sm:$0xff] %v2011
        %2077 = vst [vmem:[%s2064 + $0x60] sm:$0xff] %v2012
        %2078 = vst [vmem:[%s2064 + $0x68] sm:$0xff] %v2013
        %2079 = vst [vmem:[%s2064 + $0x70] sm:$0xff] %v2014
        %2080 = vst [vmem:[%s2064 + $0x78] sm:$0xff] %v2015
        %2081 = vst [vmem:[%s2064 + $0x80] sm:$0xff] %v2016
        %2082 = vst [vmem:[%s2064 + $0x88] sm:$0xff] %v2017
        %2083 = vst [vmem:[%s2064 + $0x90] sm:$0xff] %v2018
        %2084 = vst [vmem:[%s2064 + $0x98] sm:$0xff] %v2019
        %2085 = vst [vmem:[%s2064 + $0xa0] sm:$0xff] %v2020
        %2086 = vst [vmem:[%s2064 + $0xa8] sm:$0xff] %v2021
        %2087 = vst [vmem:[%s2064 + $0xb0] sm:$0xff] %v2022
        %2088 = vst [vmem:[%s2064 + $0xb8] sm:$0xff] %v2023
        %2089 = vst [vmem:[%s2064 + $0xc0] sm:$0xff] %v2024
        %2090 = vst [vmem:[%s2064 + $0xc8] sm:$0xff] %v2025
        %2091 = vst [vmem:[%s2064 + $0xd0] sm:$0xff] %v2026
        %2092 = vst [vmem:[%s2064 + $0xd8] sm:$0xff] %v2027
        %2093 = vst [vmem:[%s2064 + $0xe0] sm:$0xff] %v2028
        %2094 = vst [vmem:[%s2064 + $0xe8] sm:$0xff] %v2029
        %2095 = vst [vmem:[%s2064 + $0xf0] sm:$0xff] %v2030
        %2096 = vst [vmem:[%s2064 + $0xf8] sm:$0xff] %v2031
        %v2129 = vunpack.c.l.b16 %v1620
        %v2130 = vunpack.c.l.b16 %v1621
        %v2131 = vunpack.c.h.b16 %v1620
        %v2132 = vunpack.c.h.b16 %v1621
        %v2133 = vunpack.c.l.b16 %v1626
        %v2134 = vunpack.c.l.b16 %v1627
        %v2135 = vunpack.c.h.b16 %v1626
        %v2136 = vunpack.c.h.b16 %v1627
        %v2137 = vunpack.c.l.b16 %v1632
        %v2138 = vunpack.c.l.b16 %v1633
        %v2139 = vunpack.c.h.b16 %v1632
        %v2140 = vunpack.c.h.b16 %v1633
        %v2141 = vunpack.c.l.b16 %v1638
        %v2142 = vunpack.c.l.b16 %v1639
        %v2143 = vunpack.c.h.b16 %v1638
        %v2144 = vunpack.c.h.b16 %v1639
        %v2145 = vunpack.c.l.b16 %v1644
        %v2146 = vunpack.c.l.b16 %v1645
        %v2147 = vunpack.c.h.b16 %v1644
        %v2148 = vunpack.c.h.b16 %v1645
        %v2149 = vunpack.c.l.b16 %v1650
        %v2150 = vunpack.c.l.b16 %v1651
        %v2151 = vunpack.c.h.b16 %v1650
        %v2152 = vunpack.c.h.b16 %v1651
        %v2153 = vunpack.c.l.b16 %v1656
        %v2154 = vunpack.c.l.b16 %v1657
        %v2155 = vunpack.c.h.b16 %v1656
        %v2156 = vunpack.c.h.b16 %v1657
        %v2157 = vunpack.c.l.b16 %v1662
        %v2158 = vunpack.c.l.b16 %v1663
        %v2159 = vunpack.c.h.b16 %v1662
        %v2160 = vunpack.c.h.b16 %v1663
        %v2161 = vunpack.c.l.b16 %v1668
        %v2162 = vunpack.c.l.b16 %v1669
        %v2163 = vunpack.c.h.b16 %v1668
        %v2164 = vunpack.c.h.b16 %v1669
        %v2165 = vunpack.c.l.b16 %v1674
        %v2166 = vunpack.c.l.b16 %v1675
        %v2167 = vunpack.c.h.b16 %v1674
        %v2168 = vunpack.c.h.b16 %v1675
        %v2169 = vunpack.c.l.b16 %v1680
        %v2170 = vunpack.c.l.b16 %v1681
        %v2171 = vunpack.c.h.b16 %v1680
        %v2172 = vunpack.c.h.b16 %v1681
        %v2173 = vunpack.c.l.b16 %v1686
        %v2174 = vunpack.c.l.b16 %v1687
        %v2175 = vunpack.c.h.b16 %v1686
        %v2176 = vunpack.c.h.b16 %v1687
        %v2177 = vunpack.c.l.b16 %v1692
        %v2178 = vunpack.c.l.b16 %v1693
        %v2179 = vunpack.c.h.b16 %v1692
        %v2180 = vunpack.c.h.b16 %v1693
        %v2181 = vunpack.c.l.b16 %v1698
        %v2182 = vunpack.c.l.b16 %v1699
        %v2183 = vunpack.c.h.b16 %v1698
        %v2184 = vunpack.c.h.b16 %v1699
        %v2185 = vunpack.c.l.b16 %v1704
        %v2186 = vunpack.c.l.b16 %v1705
        %v2187 = vunpack.c.h.b16 %v1704
        %v2188 = vunpack.c.h.b16 %v1705
        %v2189 = vunpack.c.l.b16 %v1710
        %v2190 = vunpack.c.l.b16 %v1711
        %v2191 = vunpack.c.h.b16 %v1710
        %v2192 = vunpack.c.h.b16 %v1711
        %v2193 = vpack.c.b16 %v2130, %v2129
        %v2194 = vpack.c.b16 %v2132, %v2131
        %v2195 = vpack.c.b16 %v2134, %v2133
        %v2196 = vpack.c.b16 %v2136, %v2135
        %v2197 = vpack.c.b16 %v2138, %v2137
        %v2198 = vpack.c.b16 %v2140, %v2139
        %v2199 = vpack.c.b16 %v2142, %v2141
        %v2200 = vpack.c.b16 %v2144, %v2143
        %v2201 = vpack.c.b16 %v2146, %v2145
        %v2202 = vpack.c.b16 %v2148, %v2147
        %v2203 = vpack.c.b16 %v2150, %v2149
        %v2204 = vpack.c.b16 %v2152, %v2151
        %v2205 = vpack.c.b16 %v2154, %v2153
        %v2206 = vpack.c.b16 %v2156, %v2155
        %v2207 = vpack.c.b16 %v2158, %v2157
        %v2208 = vpack.c.b16 %v2160, %v2159
        %v2209 = vpack.c.b16 %v2162, %v2161
        %v2210 = vpack.c.b16 %v2164, %v2163
        %v2211 = vpack.c.b16 %v2166, %v2165
        %v2212 = vpack.c.b16 %v2168, %v2167
        %v2213 = vpack.c.b16 %v2170, %v2169
        %v2214 = vpack.c.b16 %v2172, %v2171
        %v2215 = vpack.c.b16 %v2174, %v2173
        %v2216 = vpack.c.b16 %v2176, %v2175
        %v2217 = vpack.c.b16 %v2178, %v2177
        %v2218 = vpack.c.b16 %v2180, %v2179
        %v2219 = vpack.c.b16 %v2182, %v2181
        %v2220 = vpack.c.b16 %v2184, %v2183
        %v2221 = vpack.c.b16 %v2186, %v2185
        %v2222 = vpack.c.b16 %v2188, %v2187
        %v2223 = vpack.c.b16 %v2190, %v2189
        %v2224 = vpack.c.b16 %v2192, %v2191
        %s2257 = scalar_lea.vmem %s234, 512 [#allocation8]
        %2258 = vst [vmem:[%s2257] sm:$0xff] %v2193
        %2259 = vst [vmem:[%s2257 + $0x8] sm:$0xff] %v2194
        %2260 = vst [vmem:[%s2257 + $0x10] sm:$0xff] %v2195
        %2261 = vst [vmem:[%s2257 + $0x18] sm:$0xff] %v2196
        %2262 = vst [vmem:[%s2257 + $0x20] sm:$0xff] %v2197
        %2263 = vst [vmem:[%s2257 + $0x28] sm:$0xff] %v2198
        %2264 = vst [vmem:[%s2257 + $0x30] sm:$0xff] %v2199
        %2265 = vst [vmem:[%s2257 + $0x38] sm:$0xff] %v2200
        %2266 = vst [vmem:[%s2257 + $0x40] sm:$0xff] %v2201
        %2267 = vst [vmem:[%s2257 + $0x48] sm:$0xff] %v2202
        %2268 = vst [vmem:[%s2257 + $0x50] sm:$0xff] %v2203
        %2269 = vst [vmem:[%s2257 + $0x58] sm:$0xff] %v2204
        %2270 = vst [vmem:[%s2257 + $0x60] sm:$0xff] %v2205
        %2271 = vst [vmem:[%s2257 + $0x68] sm:$0xff] %v2206
        %2272 = vst [vmem:[%s2257 + $0x70] sm:$0xff] %v2207
        %2273 = vst [vmem:[%s2257 + $0x78] sm:$0xff] %v2208
        %2274 = vst [vmem:[%s2257 + $0x80] sm:$0xff] %v2209
        %2275 = vst [vmem:[%s2257 + $0x88] sm:$0xff] %v2210
        %2276 = vst [vmem:[%s2257 + $0x90] sm:$0xff] %v2211
        %2277 = vst [vmem:[%s2257 + $0x98] sm:$0xff] %v2212
        %2278 = vst [vmem:[%s2257 + $0xa0] sm:$0xff] %v2213
        %2279 = vst [vmem:[%s2257 + $0xa8] sm:$0xff] %v2214
        %2280 = vst [vmem:[%s2257 + $0xb0] sm:$0xff] %v2215
        %2281 = vst [vmem:[%s2257 + $0xb8] sm:$0xff] %v2216
        %2282 = vst [vmem:[%s2257 + $0xc0] sm:$0xff] %v2217
        %2283 = vst [vmem:[%s2257 + $0xc8] sm:$0xff] %v2218
        %2284 = vst [vmem:[%s2257 + $0xd0] sm:$0xff] %v2219
        %2285 = vst [vmem:[%s2257 + $0xd8] sm:$0xff] %v2220
        %2286 = vst [vmem:[%s2257 + $0xe0] sm:$0xff] %v2221
        %2287 = vst [vmem:[%s2257 + $0xe8] sm:$0xff] %v2222
        %2288 = vst [vmem:[%s2257 + $0xf0] sm:$0xff] %v2223
        %2289 = vst [vmem:[%s2257 + $0xf8] sm:$0xff] %v2224
        %s2290 = sand.u32 %s113, 1
        %s2291 = scalar_lea.sflag [#allocation4], %s2290
        %s2292 = sand.u32 %s113, 1
        %s2293 = smul.addr %s2292, 768
        %s2294 = scalar_lea.vmem [#allocation8], %s2293
        // Predicated region
        $region45: #{tpu_custom_call.1} parent=31 // pred_check
          %p2295 = pneg %p123
        $region46: #{tpu_custom_call.1} parent=31 // pred_check_branch
          %2297 = sbr.rel (%p2295) target = $region48
        $region47: #{tpu_custom_call.1} parent=31 // pred_region
          #allocation10 [shape = 'u32[6]{0}', space=smem, size = 0x18, scoped, tag = 'DMA stride descriptor']
          %s2298 = smul.u32 32, %s26
          %s2300 = ssub.s32 12288, 12288
          %2301 = vsyncadd %s2291, %s2300
          %s2302 = smul.addr %s2298, 2
          %s2303 = smul.addr %s25, 128
          %s2304 = sadd.s32 %s2302, %s2303
          %s2305 = smul.addr %s2304, 64
          %s2306 = scalar_lea.hbm %s3, %s2305
          %s2308 = sshll.u32 1, 14
          %s2309 = sxor.u32 4294967295, %s2308
          %s2312 = sshll.u32 7, 18
          %s2313 = sxor.u32 4294967295, %s2312
          %s2314 = sand.u32 0, %s2313
          %s2316 = sor.u32 %s2314, 0
          %s2318 = sshll.u32 3, 24
          %s2319 = sxor.u32 4294967295, %s2318
          %s2320 = sand.u32 %s2316, %s2319
          %s2322 = sor.u32 %s2320, 0
          %s2323 = sshll.u32 %s2294, 4
          %s2324 = int_to_ptr.vmem [resolvable:$true] %s2323
          %2330 = sst [smem:[#allocation10]] 4096
          %s2331 = scalar_lea.smem [#allocation10], 1
          %2332 = sst [smem:[%s2331]] 16384
          %s2333 = scalar_lea.smem [#allocation10], 2
          %2334 = sst [smem:[%s2333]] 32
          %s2335 = scalar_lea.smem [#allocation10], 3
          %2336 = sst [smem:[%s2335]] 128
          %s2337 = scalar_lea.smem [#allocation10], 4
          %2338 = sst [smem:[%s2337]] 128
          %s2339 = scalar_lea.smem [#allocation10], 5
          %2340 = sst [smem:[%s2339]] 8
          %2342 = dma.general %s2324, 12288, %s2306, %s2291, [#allocation9], [#allocation10], %s2322, 0
        $region48: #{tpu_custom_call.1} parent=31 // pred_fallthru
          _
      $region32: #{tpu_custom_call.1} parent=5 // pred_fallthru
        _
      %p2343 = scmp.le.s32.totalorder 2, %s16
      // Predicated region
      $region49: #{tpu_custom_call.1} parent=5 // pred_check
        %p2344 = pneg %p2343
      $region50: #{tpu_custom_call.1} parent=5 // pred_check_branch
        %2346 = sbr.rel (%p2344) target = $region52
      $region51: #{tpu_custom_call.1} parent=5 // pred_region
        %s2347 = ssub.s32 %s16, 2
        // Predicated region
        $region53: #{tpu_custom_call.1} parent=51 // pred_check
          %p2348 = pneg %p129
        $region54: #{tpu_custom_call.1} parent=51 // pred_check_branch
          %2350 = sbr.rel (%p2348) target = $region56
        $region55: #{tpu_custom_call.1} parent=51 // pred_region
          %s2351 = sand.u32 %s114, 1
          %s2352 = scalar_lea.sflag [#allocation4], %s2351
          %s2353 = sand.u32 %s114, 1
          %s2354 = smul.addr %s2353, 768
          %s2355 = scalar_lea.vmem [#allocation8], %s2354
          %2356 = dma.done %s2352, 12288
        $region56: #{tpu_custom_call.1} parent=51 // pred_fallthru
          _
      $region52: #{tpu_custom_call.1} parent=5 // pred_fallthru
        _
    $region6: #{tpu_custom_call.1} parent=1 // loop_footer
      %s20 = sadd.s32 1, %s16
    $region7: #{tpu_custom_call.1} parent=1 // loop_footer_branch
      %15 = sbr.rel target = $region3
    $region8: #{tpu_custom_call.1} parent=1 // loop_exit
      _
    %2357 = vsyncpa [#allocation3], 1
    %s2358 = scalar_lea.sflag [#allocation3], 1
    %2359 = vsyncpa %s2358, 1
    %2360 = vsyncpa [#allocation6], 1
    %2361 = vsyncpa [#allocation4], 1
    %s2362 = scalar_lea.sflag [#allocation4], 1
    %2363 = vsyncpa %s2362, 1

</llo_original>
